<compile_context>
chip_gen: v6e
topology: v6e:2x2x1
jax: 0.10.0
libtpu: 0.0.40
codegen_flags: <defaults>
</compile_context>

<pallas_src>
import numpy as np
import jax
import jax.numpy as jnp
from jax import lax
from jax.experimental import pallas as pl
from jax.experimental.pallas import tpu as pltpu


def _round_up(x, m):
    return (x + m - 1) // m * m


def _cdiv(a, b):
    return -(-a // b)


# ------------------------------ Pallas kernels -------------------------------

def _matmul_prelu_t_kernel(a_ref, b_ref, alpha_ref, o_ref):
    """o = PReLU(alpha)(a @ b).T for one tile; single full-K step, no scratch.

    a:(tm,K) bf16, b:(K,tn) bf16 -> fp32 MXU accumulation; PReLU fused into the
    epilogue; the tile is stored transposed (tn, tm) so the caller's NCHW
    recovery is an outer-dim permute instead of a minor-dim transpose.
    """
    y = jnp.dot(a_ref[...], b_ref[...], preferred_element_type=jnp.float32)
    alpha = alpha_ref[0]                              # PReLU slope from SMEM
    y = jnp.where(y >= 0.0, y, alpha * y)
    o_ref[...] = y.T.astype(o_ref.dtype)              # (tn, tm) lane-dense store


def _matmul_prelu_t_acc_kernel(a_ref, b_ref, alpha_ref, o_ref, acc_ref):
    """K-tiled variant: fp32 accumulator scratch across the "arbitrary" K axis."""
    @pl.when(pl.program_id(2) == 0)
    def _init():
        acc_ref[...] = jnp.zeros_like(acc_ref)

    acc_ref[...] += jnp.dot(a_ref[...], b_ref[...],
                            preferred_element_type=jnp.float32)

    @pl.when(pl.program_id(2) == pl.num_programs(2) - 1)
    def _finalize():
        y = acc_ref[...]
        y = jnp.where(y >= 0.0, y, alpha_ref[0] * y)
        o_ref[...] = y.T.astype(o_ref.dtype)


# ------------------------------ kernel wrapper --------------------------------

def _choose_tm(M):
    """M tile: 16-row granularity (bf16 sublane pairs); >=4 blocks once M is big."""
    Mr = _round_up(M, 16)
    if Mr <= 512 and Mr % 128 != 0:
        return Mr                     # single M block (tm == Mp): minimal padding
    # >=4 blocks along the parallel M axis (2 steps/TensorCore on v7x), growing
    # toward 512-wide tiles for large M (v6e HBM-roofline sweet spot).
    return int(min(512, max(128, _round_up(max(M // 4, 1), 128))))


def matmul_prelu_t(a_bf16, b_bf16, alpha_arr, *, out_dtype=jnp.float32):
    """PReLU(alpha)(a @ b).T on the MXU. a:(M,K) bf16, b:(K,N) bf16 -> (N,M)."""
    M, K = a_bf16.shape
    K2, N = b_bf16.shape
    assert K == K2

    tn = 128                                       # lane-dense output stores
    tm = _choose_tm(M)
    Kp = _round_up(K, 128)
    out_bytes = jnp.dtype(out_dtype).itemsize

    # Double-buffered working set of a full-K block (bf16 A/B, out, fp32 temp).
    def _fullk_vmem(tm_):
        return (2 * 2 * (tm_ * Kp + Kp * tn)       # A + B tiles, x2 buffers, bf16
                + 2 * out_bytes * tn * tm_         # out tile, x2 buffers
                + 4 * tm_ * tn)                    # fp32 epilogue temp

    # Budget so the single-pass full-K design also fits v7x (64 MiB VMEM) and a
    # raised-but-modest scoped limit on v5e.
    VMEM_BUDGET = 24 * 2**20
    while tm > 128 and _fullk_vmem(tm) > VMEM_BUDGET:
        tm -= 128
    use_fullk = _fullk_vmem(tm) <= VMEM_BUDGET

    Mp = _round_up(M, tm)
    Np = _round_up(N, tn)

    if (Mp, Kp) != (M, K):
        a_bf16 = jnp.pad(a_bf16, ((0, Mp - M), (0, Kp - K)))
    if (Kp, Np) != (K, N):
        b_bf16 = jnp.pad(b_bf16, ((0, Kp - K), (0, Np - N)))

    cost = pl.CostEstimate(
        flops=2 * Mp * Kp * Np,
        transcendentals=0,
        bytes_accessed=2 * (Mp * Kp + Kp * Np) + out_bytes * Mp * Np)

    if use_fullk:
        vmem_need = _fullk_vmem(tm)
        out = pl.pallas_call(
            _matmul_prelu_t_kernel,
            out_shape=jax.ShapeDtypeStruct((Np, Mp), out_dtype),
            grid_spec=pltpu.PrefetchScalarGridSpec(
                num_scalar_prefetch=0,
                grid=(Mp // tm, Np // tn),               # single full-K step
                in_specs=[
                    pl.BlockSpec((tm, Kp), lambda i, j: (i, 0)),
                    pl.BlockSpec((Kp, tn), lambda i, j: (0, j)),
                    pl.BlockSpec(memory_space=pltpu.MemorySpace.SMEM),   # alpha
                ],
                out_specs=pl.BlockSpec((tn, tm), lambda i, j: (j, i)),
            ),
            compiler_params=pltpu.CompilerParams(
                dimension_semantics=("parallel", "parallel"),
                vmem_limit_bytes=int(min(64 * 2**20,
                                         max(32 * 2**20, 3 * vmem_need)))),
            cost_estimate=cost,
        )(a_bf16, b_bf16, alpha_arr)
    else:
        # Large-K fallback (huge C_in, e.g. on v7x's 64 MiB VMEM): tile K with an
        # fp32 accumulator; init/finalize gated by pl.when on the K grid axis.
        nk = max(2, _cdiv(Kp, 2048))
        tk = _round_up(_cdiv(Kp, nk), 128)
        Kp2 = tk * nk
        if Kp2 != Kp:
            a_bf16 = jnp.pad(a_bf16, ((0, 0), (0, Kp2 - Kp)))
            b_bf16 = jnp.pad(b_bf16, ((0, Kp2 - Kp), (0, 0)))
            Kp = Kp2
        vmem_need = (2 * 2 * (tm * tk + tk * tn)
                     + 2 * out_bytes * tn * tm + 4 * tm * tn)
        out = pl.pallas_call(
            _matmul_prelu_t_acc_kernel,
            out_shape=jax.ShapeDtypeStruct((Np, Mp), out_dtype),
            grid_spec=pltpu.PrefetchScalarGridSpec(
                num_scalar_prefetch=0,
                grid=(Mp // tm, Np // tn, Kp // tk),
                in_specs=[
                    pl.BlockSpec((tm, tk), lambda i, j, k: (i, k)),
                    pl.BlockSpec((tk, tn), lambda i, j, k: (k, j)),
                    pl.BlockSpec(memory_space=pltpu.MemorySpace.SMEM),   # alpha
                ],
                out_specs=pl.BlockSpec((tn, tm), lambda i, j, k: (j, i)),
                scratch_shapes=[pltpu.VMEM((tm, tn), jnp.float32)],
            ),
            compiler_params=pltpu.CompilerParams(
                dimension_semantics=("parallel", "parallel", "arbitrary"),
                vmem_limit_bytes=int(min(64 * 2**20,
                                         max(32 * 2**20, 3 * vmem_need)))),
            cost_estimate=cost,
        )(a_bf16, b_bf16, alpha_arr)

    if (Np, Mp) != (N, M):
        out = out[:N, :M]
    return out


# --------------------------- conv lowering (glue) -----------------------------

def _im2col_strided(x_nhwc, k, stride, dilation, padding):
    """im2col via k*k cheap strided slices (no gathers, no 6-D minor transpose).

    Rows ordered (n, oh, ow); columns ordered (kh, kw, c) with c fastest.
    """
    N, H, W, C = x_nhwc.shape
    xp = jnp.pad(x_nhwc, ((0, 0), (padding, padding), (padding, padding), (0, 0)))
    Hp, Wp = H + 2 * padding, W + 2 * padding
    H_out = (Hp - dilation * (k - 1) - 1) // stride + 1
    W_out = (Wp - dilation * (k - 1) - 1) // stride + 1
    taps = []
    for kh in range(k):
        for kw in range(k):
            h0, w0 = kh * dilation, kw * dilation
            taps.append(lax.slice(
                xp,
                (0, h0, w0, 0),
                (N, h0 + (H_out - 1) * stride + 1,
                 w0 + (W_out - 1) * stride + 1, C),
                (1, stride, stride, 1)))
            # each tap: (N, H_out, W_out, C)
    cols = jnp.concatenate(taps, axis=-1)            # (N, H_out, W_out, k*k*C)
    return cols.reshape(N * H_out * W_out, k * k * C), (N, H_out, W_out)


def convblock3_forward(x_nchw, w_oihw, alpha, *, stride=2, dilation=3, padding=4,
                       out_dtype=jnp.float32):
    """PyTorch-semantics Conv2d(k=4, s=2, d=3, p=4, bias=False) + PReLU(alpha)."""
    C_out, C_in, k, _ = w_oihw.shape
    x_nhwc = jnp.transpose(x_nchw.astype(jnp.bfloat16), (0, 2, 3, 1))
    cols, (N, H_out, W_out) = _im2col_strided(x_nhwc, k, stride, dilation, padding)
    wm = w_oihw.astype(jnp.bfloat16).transpose(2, 3, 1, 0).reshape(k * k * C_in, C_out)
    alpha_arr = jnp.asarray(alpha, jnp.float32).reshape((1,))
    out_t = matmul_prelu_t(cols, wm, alpha_arr, out_dtype=out_dtype)  # (C_out, M)
    out = out_t.reshape(C_out, N, H_out, W_out)
    # Outer-dim permute only (inner H_out*W_out blocks stay contiguous) -> NCHW.
    return jnp.transpose(out, (1, 0, 2, 3))


# ---------------------------- pure-JAX reference ------------------------------

def ref_forward(x_nchw, w_oihw, alpha, *, input_dtype=jnp.float32):
    """Reference conv+PReLU; input_dtype=bfloat16 mirrors the kernel's MXU precision."""
    xr = x_nchw.astype(input_dtype).astype(jnp.float32)
    wr = w_oihw.astype(input_dtype).astype(jnp.float32)
    y = lax.conv_general_dilated(
        xr, wr, window_strides=(2, 2), padding=[(4, 4), (4, 4)],
        rhs_dilation=(3, 3), dimension_numbers=("NCHW", "OIHW", "NCHW"),
        precision=lax.Precision.HIGHEST)
    return jnp.where(y >= 0, y, alpha * y)


# ------------------------------------ main -------------------------------------

if __name__ == "__main__":
    key = jax.random.PRNGKey(0)
    kx, kw = jax.random.split(key)

    Nb, C_in, H, W = 2, 64, 32, 32           # small, lane/sublane friendly
    C_out = 128                              # multiple of 128 -> lane-dense stores
    x = jax.random.normal(kx, (Nb, C_in, H, W), jnp.float32)
    w = 0.05 * jax.random.normal(kw, (C_out, C_in, 4, 4), jnp.float32)
    alpha = jnp.float32(0.25)                # nn.PReLU() default init

    out = jax.block_until_ready(convblock3_forward(x, w, alpha))
    assert out.shape == (Nb, C_out, H // 2, W // 2), out.shape
    assert out.dtype == jnp.float32, out.dtype

    # Primary check: reference computed with the SAME input precision as the
    # kernel path (bf16 operands, fp32 accumulation).  The previous failure was
    # purely the bf16-vs-fp32 rounding gap, not a kernel bug.
    ref_bf16 = jax.block_until_ready(
        ref_forward(x, w, alpha, input_dtype=jnp.bfloat16))
    np.testing.assert_allclose(np.asarray(out), np.asarray(ref_bf16),
                               rtol=2e-2, atol=2e-2)

    # Loose sanity bound against the exact fp32 reference (bounds bf16 rounding;
    # previously measured max |diff| ~= 1.4e-2 at this shape).
    ref_f32 = jax.block_until_ready(
        ref_forward(x, w, alpha, input_dtype=jnp.float32))
    max_abs_err = float(jnp.max(jnp.abs(out - ref_f32)))
    assert max_abs_err < 0.1, f"bf16 rounding error unexpectedly large: {max_abs_err}"

    print("KERNEL_OK")
</pallas_src>

<mosaic_0001>
module attributes {stable_mosaic.version = 11 : i64} {
  func.func @_matmul_prelu_t_kernel(%arg0: i32, %arg1: i32, %arg2: memref<128x1024xbf16, #tpu.memory_space<vmem>>, %arg3: memref<1024x128xbf16, #tpu.memory_space<vmem>>, %arg4: memref<1xf32, #tpu.memory_space<smem>>, %arg5: memref<128x128xf32, #tpu.memory_space<vmem>>) attributes {dimension_semantics = [#tpu.dimension_semantics<parallel>, #tpu.dimension_semantics<parallel>], iteration_bounds = array<i64: 4, 1>, scalar_prefetch = 0 : i64, scratch_operands = 0 : i64, tpu.core_type = #tpu.core_type<tc>, window_params = [{transform_indices = @transform_0, window_bounds = array<i64: 128, 1024>}, {transform_indices = @transform_1, window_bounds = array<i64: 1024, 128>}, {transform_indices = @transform_2, window_bounds = array<i64: 1>}, {transform_indices = @transform_3, window_bounds = array<i64: 128, 128>}]} {
    %c0 = arith.constant 0 : index
    %c0_0 = arith.constant 0 : index
    %0 = vector.load %arg2[%c0, %c0_0] : memref<128x1024xbf16, #tpu.memory_space<vmem>>, vector<128x1024xbf16>
    %c0_1 = arith.constant 0 : index
    %c0_2 = arith.constant 0 : index
    %1 = vector.load %arg3[%c0_1, %c0_2] : memref<1024x128xbf16, #tpu.memory_space<vmem>>, vector<1024x128xbf16>
    %cst = arith.constant dense<0.000000e+00> : vector<128x128xf32>
    %2 = tpu.matmul %0, %1, %cst {dimension_numbers = #tpu.dot_dimension_numbers<[1], [0], [0], [1], [0, 0, 1, 1], [], []>} : vector<128x1024xbf16>, vector<1024x128xbf16>, vector<128x128xf32> -> vector<128x128xf32>
    %c0_3 = arith.constant 0 : index
    %3 = memref.load %arg4[%c0_3] : memref<1xf32, #tpu.memory_space<smem>>
    %cst_4 = arith.constant 0.000000e+00 : f32
    %4 = vector.broadcast %cst_4 : f32 to vector<128x128xf32>
    %5 = arith.cmpf oge, %2, %4 : vector<128x128xf32>
    %6 = vector.broadcast %3 : f32 to vector<128x128xf32>
    %7 = arith.mulf %6, %2 : vector<128x128xf32>
    %8 = arith.select %5, %2, %7 : vector<128x128xi1>, vector<128x128xf32>
    %9 = tpu.transpose %8, [1, 0] : vector<128x128xf32> -> vector<128x128xf32>
    %c0_5 = arith.constant 0 : index
    %c0_6 = arith.constant 0 : index
    %10 = vector.load %arg5[%c0_5, %c0_6] : memref<128x128xf32, #tpu.memory_space<vmem>>, vector<128x128xf32>
    tpu.vector_store %arg5[%c0_5, %c0_6], %9 {strides = array<i32>} : memref<128x128xf32, #tpu.memory_space<vmem>>, vector<128x128xf32>,
    return
  }
  func.func @transform_0(%arg0: i32, %arg1: i32) -> (i32, i32) {
    %c0_i32 = arith.constant 0 : i32
    %c0_i32_0 = arith.constant 0 : i32
    return %arg0, %c0_i32 : i32, i32
  }
  func.func @transform_1(%arg0: i32, %arg1: i32) -> (i32, i32) {
    %c0_i32 = arith.constant 0 : i32
    %c0_i32_0 = arith.constant 0 : i32
    return %c0_i32, %arg1 : i32, i32
  }
  func.func @transform_2(%arg0: i32, %arg1: i32) -> i32 {
    %c0_i32 = arith.constant 0 : i32
    %c0_i32_0 = arith.constant 0 : i32
    return %c0_i32 : i32
  }
  func.func @transform_3(%arg0: i32, %arg1: i32) -> (i32, i32) {
    %c0_i32 = arith.constant 0 : i32
    return %arg1, %arg0 : i32, i32
  }
}

</mosaic_0001>

<llo_original>
// kernel: tpu_custom_call.1
$region0: #{tpu_custom_call.1}
  #allocation0 [shape = 'u32[]', space=smem, size = 0x4, offset = 0x4, fixed_abs, tag = 'smem constant byte address 0x4 - core index']
  #allocation1 [shape = 'u32[144,128]{1,0:T(1,128)}', space=vmem, size = 0x12000, scoped, tag = 'internal scratch']
  #allocation2 [shape = 'f32[1]{0:T(128)S(6)}', space=smem, size = 0x200, scoped, tag = 'scoped memory for tpu_custom_call.1']
  %s0 = inlined_call_operand.hbm [shape: bf16[512,1024], index: 0, kind: input, shape index: {}]
  %s1 = inlined_call_operand.hbm [shape: bf16[1024,128], index: 1, kind: input, shape index: {}]
  %s2 = inlined_call_operand.<no memory space> [shape: f32[1], index: 2, kind: input, shape index: {}]
  %s3 = inlined_call_operand.hbm [shape: f32[128,512], index: 3, kind: output, shape index: {}]
  %s4 = sld [smem:[#allocation0]]
  $region53: #{tpu_custom_call.1} parent=0
    _
  %s6 = ssub.s32 1, %s4
  %s7 = scalar_select 0, %s6, %s4
  %8 = sst [smem:[#allocation2]] %s2
  $region1: #{tpu_custom_call.1} parent=0
    #allocation3 [shape = 'u8[524288]{0}', space=vmem, size = 0x80000, scoped, tag = 'input window, operand 0']
    #allocation4 [shape = 's32[2]{0}', space=sflag, size = 0x8, scoped, tag = 'scoped memory for tpu_custom_call.1']
    #allocation5 [shape = 's32[2]{0}', space=sflag, size = 0x8, scoped, tag = 'scoped memory for tpu_custom_call.1']
    #allocation6 [shape = 'u8[262144]{0}', space=vmem, size = 0x40000, scoped, tag = 'input window, operand 1, single buffered']
    #allocation7 [shape = 's32[1]{0}', space=sflag, size = 0x4, scoped, tag = 'scoped memory for tpu_custom_call.1']
    #allocation8 [shape = 'u8[131072]{0}', space=vmem, size = 0x20000, scoped, tag = 'output window, operand 0']
    %9 = vsyncpa [#allocation4], 0
    %s10 = scalar_lea.sflag [#allocation4], 1
    %11 = vsyncpa %s10, 0
    %12 = vsyncpa [#allocation7], 0
    %13 = vsyncpa [#allocation5], 0
    %s14 = scalar_lea.sflag [#allocation5], 1
    %15 = vsyncpa %s14, 0
    loop: start=0, step=1, limit=6
    $region2: #{tpu_custom_call.1} parent=1 // loop_pre_header
      _
    $region3: #{tpu_custom_call.1} parent=1 // loop_header
      %s17 = sphi 0, %s21
      %p18 = scmp.ge.s32.totalorder %s17, 6
      %s24 = sphi 0, %s36
      %s25 = sphi 0, %s32
      %s26 = sphi 0, %s24
      %s27 = sphi 0, %s25
      %s28 = sphi 0, %s26
      %s29 = sphi 0, %s27
      %s39 = sphi 0, %s41
      %s42 = sphi 0, %s39
      %s43 = sphi 0, %s42
      %s59 = sphi 0, %s43
      %s65 = sphi 0, %s67
      %s68 = sphi 0, %s65
      %s69 = sphi 0, %s68
      %s85 = sphi 0, %s69
      %s89 = sphi 0, %s89
      %s91 = sphi 0, %s89
      %s92 = sphi 0, %s91
      %s106 = sphi 0, %s92
      %s114 = sphi 0, %s116
      %s117 = sphi 0, %s114
      %s118 = sphi 0, %s117
      %s134 = sphi 0, %s118
    $region4: #{tpu_custom_call.1} parent=1 // loop_header_branch
      %20 = sbr.rel (%p18) target = $region8
    $region5: #{tpu_custom_call.1} parent=1 // loop_body
      %s22 = ssub.s32 %s17, 1
      %s23 = ssub.s32 %s17, 2
      %s30 = sadd.s32 1, %s25
      %p31 = scmp.ge.s32.totalorder %s30, 1
      %s32 = scalar_select %p31, 0, %s30
      %s33 = sadd.s32 1, %s24
      %s34 = scalar_select %p31, %s33, %s24
      %p35 = scmp.ge.s32.totalorder %s34, 4
      %s36 = scalar_select %p35, 0, %s34
      %s37 = ssub.s32 %s24, %s36
      %p38 = scmp.eq.s32.totalorder %s37, 0
      %s40 = sadd.s32 %s39, 1
      %s41 = scalar_select %p38, %s39, %s40
      %p44 = pneg %p38
      %p45 = scmp.eq.s32.totalorder %s17, 3
      %p46 = por %p44, %p45
      %p47 = scmp.ne.s32.totalorder %s39, %s42
      %p48 = scmp.eq.s32.totalorder %s17, 0
      %p49 = por %p47, %p48
      %p50 = scmp.ne.s32.totalorder %s39, %s42
      %p51 = scmp.eq.s32.totalorder %s22, 3
      %p52 = por %p50, %p51
      %p53 = scmp.ne.s32.totalorder %s42, %s43
      %p54 = scmp.eq.s32.totalorder %s22, 0
      %p55 = por %p53, %p54
      %p56 = scmp.ne.s32.totalorder %s42, %s43
      %p57 = scmp.eq.s32.totalorder %s23, 3
      %p58 = por %p56, %p57
      %p60 = scmp.ne.s32.totalorder %s43, %s59
      %p61 = scmp.eq.s32.totalorder %s23, 0
      %p62 = por %p60, %p61
      %s63 = ssub.s32 %s25, %s32
      %p64 = scmp.eq.s32.totalorder %s63, 0
      %s66 = sadd.s32 %s65, 1
      %s67 = scalar_select %p64, %s65, %s66
      %p70 = pneg %p64
      %p71 = scmp.eq.s32.totalorder %s17, 3
      %p72 = por %p70, %p71
      %p73 = scmp.ne.s32.totalorder %s65, %s68
      %p74 = scmp.eq.s32.totalorder %s17, 0
      %p75 = por %p73, %p74
      %p76 = scmp.ne.s32.totalorder %s65, %s68
      %p77 = scmp.eq.s32.totalorder %s22, 3
      %p78 = por %p76, %p77
      %p79 = scmp.ne.s32.totalorder %s68, %s69
      %p80 = scmp.eq.s32.totalorder %s22, 0
      %p81 = por %p79, %p80
      %p82 = scmp.ne.s32.totalorder %s68, %s69
      %p83 = scmp.eq.s32.totalorder %s23, 3
      %p84 = por %p82, %p83
      %p86 = scmp.ne.s32.totalorder %s69, %s85
      %p87 = scmp.eq.s32.totalorder %s23, 0
      %p88 = por %p86, %p87
      %s90 = sadd.s32 %s89, 1
      %p93 = scmp.eq.s32.totalorder %s17, 3
      %p94 = scmp.ne.s32.totalorder %s89, %s91
      %p95 = scmp.eq.s32.totalorder %s17, 0
      %p96 = por %p94, %p95
      %p97 = scmp.ne.s32.totalorder %s89, %s91
      %p98 = scmp.eq.s32.totalorder %s22, 3
      %p99 = por %p97, %p98
      %p100 = scmp.ne.s32.totalorder %s91, %s92
      %p101 = scmp.eq.s32.totalorder %s22, 0
      %p102 = por %p100, %p101
      %p103 = scmp.ne.s32.totalorder %s91, %s92
      %p104 = scmp.eq.s32.totalorder %s23, 3
      %p105 = por %p103, %p104
      %p107 = scmp.ne.s32.totalorder %s92, %s106
      %p108 = scmp.eq.s32.totalorder %s23, 0
      %p109 = por %p107, %p108
      %s110 = ssub.s32 %s25, %s32
      %s111 = ssub.s32 %s24, %s36
      %s112 = sor.u32 %s110, %s111
      %p113 = scmp.eq.s32.totalorder %s112, 0
      %s115 = sadd.s32 %s114, 1
      %s116 = scalar_select %p113, %s114, %s115
      %p119 = pneg %p113
      %p120 = scmp.eq.s32.totalorder %s17, 3
      %p121 = por %p119, %p120
      %p122 = scmp.ne.s32.totalorder %s114, %s117
      %p123 = scmp.eq.s32.totalorder %s17, 0
      %p124 = por %p122, %p123
      %p125 = scmp.ne.s32.totalorder %s114, %s117
      %p126 = scmp.eq.s32.totalorder %s22, 3
      %p127 = por %p125, %p126
      %p128 = scmp.ne.s32.totalorder %s117, %s118
      %p129 = scmp.eq.s32.totalorder %s22, 0
      %p130 = por %p128, %p129
      %p131 = scmp.ne.s32.totalorder %s117, %s118
      %p132 = scmp.eq.s32.totalorder %s23, 3
      %p133 = por %p131, %p132
      %p135 = scmp.ne.s32.totalorder %s118, %s134
      %p136 = scmp.eq.s32.totalorder %s23, 0
      %p137 = por %p135, %p136
      %p138 = scmp.le.s32.totalorder 1, %s17
      %p139 = scmp.lt.s32.totalorder %s17, 5
      %p140 = pnand %p138, %p139
      %p141 = pneg %p140
      // Predicated region
      $region9: #{tpu_custom_call.1} parent=5 // pred_check
        _
      $region10: #{tpu_custom_call.1} parent=5 // pred_check_branch
        %143 = sbr.rel (%p140) target = $region12
      $region11: #{tpu_custom_call.1} parent=5 // pred_region
        %s144 = ssub.s32 %s17, 1
        // Predicated region
        $region13: #{tpu_custom_call.1} parent=11 // pred_check
          %p145 = pneg %p81
        $region14: #{tpu_custom_call.1} parent=11 // pred_check_branch
          %147 = sbr.rel (%p145) target = $region16
        $region15: #{tpu_custom_call.1} parent=11 // pred_region
          %s149 = ssub.s32 8192, 8192
          %150 = vsyncadd [#allocation7], %s149
          %s151 = smul.addr %s27, 64
          %s152 = scalar_lea.hbm %s1, %s151
          %s153 = sshll.u32 [#allocation6], 4
          %s154 = int_to_ptr.vmem [resolvable:$true] %s153
          %159 = dma.hbm_to_vmem [thread:$0]  %s152, 8192, %s154, [#allocation7], 64, 64, 4
        $region16: #{tpu_custom_call.1} parent=11 // pred_fallthru
          _
        // Predicated region
        $region17: #{tpu_custom_call.1} parent=11 // pred_check
          %p160 = pneg %p102
        $region18: #{tpu_custom_call.1} parent=11 // pred_check_branch
          %162 = sbr.rel (%p160) target = $region20
        $region19: #{tpu_custom_call.1} parent=11 // pred_region
          _
        $region20: #{tpu_custom_call.1} parent=11 // pred_fallthru
          _
      $region12: #{tpu_custom_call.1} parent=5 // pred_fallthru
        _
      %p163 = scmp.lt.s32.totalorder %s17, 4
      // Predicated region
      $region21: #{tpu_custom_call.1} parent=5 // pred_check
        %p164 = pneg %p163
      $region22: #{tpu_custom_call.1} parent=5 // pred_check_branch
        %166 = sbr.rel (%p164) target = $region24
      $region23: #{tpu_custom_call.1} parent=5 // pred_region
        // Predicated region
        $region25: #{tpu_custom_call.1} parent=23 // pred_check
          %p167 = pneg %p49
        $region26: #{tpu_custom_call.1} parent=23 // pred_check_branch
          %169 = sbr.rel (%p167) target = $region28
        $region27: #{tpu_custom_call.1} parent=23 // pred_region
          %s170 = sand.u32 %s39, 1
          %s171 = scalar_lea.sflag [#allocation4], %s170
          %s172 = sand.u32 %s39, 1
          %s173 = smul.addr %s172, 512
          %s174 = scalar_lea.vmem [#allocation3], %s173
          %s175 = smul.u32 16, %s24
          %s177 = ssub.s32 8192, 8192
          %178 = vsyncadd %s171, %s177
          %s179 = smul.addr %s175, 8
          %s180 = smul.addr %s179, 64
          %s181 = scalar_lea.hbm %s0, %s180
          %s182 = sshll.u32 %s174, 4
          %s183 = int_to_ptr.vmem [resolvable:$true] %s182
          %188 = dma.hbm_to_vmem [thread:$0]  %s181, 8192, %s183, %s171, 512, 512, 32
        $region28: #{tpu_custom_call.1} parent=23 // pred_fallthru
          _
      $region24: #{tpu_custom_call.1} parent=5 // pred_fallthru
        _
      %p189 = scmp.le.s32.totalorder 1, %s17
      %p190 = scmp.lt.s32.totalorder %s17, 5
      %p191 = pnand %p189, %p190
      %p192 = pneg %p191
      // Predicated region
      $region29: #{tpu_custom_call.1} parent=5 // pred_check
        _
      $region30: #{tpu_custom_call.1} parent=5 // pred_check_branch
        %194 = sbr.rel (%p191) target = $region32
      $region31: #{tpu_custom_call.1} parent=5 // pred_region
        %s195 = ssub.s32 %s17, 1
        %s196 = sand.u32 %s42, 1
        %s197 = scalar_lea.sflag [#allocation4], %s196
        %s198 = sand.u32 %s42, 1
        %s199 = smul.addr %s198, 512
        %s200 = scalar_lea.vmem [#allocation3], %s199
        // Predicated region
        $region33: #{tpu_custom_call.1} parent=31 // pred_check
          %p201 = pneg %p55
        $region34: #{tpu_custom_call.1} parent=31 // pred_check_branch
          %203 = sbr.rel (%p201) target = $region36
        $region35: #{tpu_custom_call.1} parent=31 // pred_region
          %204 = dma.done %s197, 8192
        $region36: #{tpu_custom_call.1} parent=31 // pred_fallthru
          _
        // Predicated region
        $region37: #{tpu_custom_call.1} parent=31 // pred_check
          %p205 = pneg %p81
        $region38: #{tpu_custom_call.1} parent=31 // pred_check_branch
          %207 = sbr.rel (%p205) target = $region40
        $region39: #{tpu_custom_call.1} parent=31 // pred_region
          %208 = dma.done [#allocation7], 8192
        $region40: #{tpu_custom_call.1} parent=31 // pred_fallthru
          _
        %s209 = sand.u32 %s42, 1
        %s210 = scalar_lea.sflag [#allocation4], %s209
        %s211 = sand.u32 %s42, 1
        %s212 = smul.addr %s211, 512
        %s213 = scalar_lea.vmem [#allocation3], %s212
        %p214 = pneg %p55
        %p215 = pneg %p52
        %p216 = pneg %p81
        %p217 = pneg %p78
        %p218 = pneg %p102
        %p219 = pneg %p99
        %p220 = pneg %p130
        %p221 = pneg %p127
        %s222 = sand.u32 %s117, 1
        %s223 = scalar_lea.sflag [#allocation5], %s222
        %s224 = sand.u32 %s117, 1
        %s225 = smul.addr %s224, 128
        %s226 = scalar_lea.vmem [#allocation8], %s225
        %s227 = smul.u32 16, %s26
        %s228 = smul.u32 16, %s27
        %v230 = vld [vmem:[%s200] sm:$0xff]
        %v231 = vld [vmem:[%s200 + $0x8] sm:$0xff]
        %v232 = vld [vmem:[%s200 + $0x10] sm:$0xff]
        %v233 = vld [vmem:[%s200 + $0x18] sm:$0xff]
        %v234 = vld [vmem:[%s200 + $0x20] sm:$0xff]
        %v235 = vld [vmem:[%s200 + $0x28] sm:$0xff]
        %v236 = vld [vmem:[%s200 + $0x30] sm:$0xff]
        %v237 = vld [vmem:[%s200 + $0x38] sm:$0xff]
        %v238 = vld [vmem:[%s200 + $0x40] sm:$0xff]
        %v239 = vld [vmem:[%s200 + $0x48] sm:$0xff]
        %v240 = vld [vmem:[%s200 + $0x50] sm:$0xff]
        %v241 = vld [vmem:[%s200 + $0x58] sm:$0xff]
        %v242 = vld [vmem:[%s200 + $0x60] sm:$0xff]
        %v243 = vld [vmem:[%s200 + $0x68] sm:$0xff]
        %v244 = vld [vmem:[%s200 + $0x70] sm:$0xff]
        %v245 = vld [vmem:[%s200 + $0x78] sm:$0xff]
        %v246 = vld [vmem:[%s200 + $0x80] sm:$0xff]
        %v247 = vld [vmem:[%s200 + $0x88] sm:$0xff]
        %v248 = vld [vmem:[%s200 + $0x90] sm:$0xff]
        %v249 = vld [vmem:[%s200 + $0x98] sm:$0xff]
        %v250 = vld [vmem:[%s200 + $0xa0] sm:$0xff]
        %v251 = vld [vmem:[%s200 + $0xa8] sm:$0xff]
        %v252 = vld [vmem:[%s200 + $0xb0] sm:$0xff]
        %v253 = vld [vmem:[%s200 + $0xb8] sm:$0xff]
        %v254 = vld [vmem:[%s200 + $0xc0] sm:$0xff]
        %v255 = vld [vmem:[%s200 + $0xc8] sm:$0xff]
        %v256 = vld [vmem:[%s200 + $0xd0] sm:$0xff]
        %v257 = vld [vmem:[%s200 + $0xd8] sm:$0xff]
        %v258 = vld [vmem:[%s200 + $0xe0] sm:$0xff]
        %v259 = vld [vmem:[%s200 + $0xe8] sm:$0xff]
        %v260 = vld [vmem:[%s200 + $0xf0] sm:$0xff]
        %v261 = vld [vmem:[%s200 + $0xf8] sm:$0xff]
        %v262 = vld [vmem:[%s200 + $0x100] sm:$0xff]
        %v263 = vld [vmem:[%s200 + $0x108] sm:$0xff]
        %v264 = vld [vmem:[%s200 + $0x110] sm:$0xff]
        %v265 = vld [vmem:[%s200 + $0x118] sm:$0xff]
        %v266 = vld [vmem:[%s200 + $0x120] sm:$0xff]
        %v267 = vld [vmem:[%s200 + $0x128] sm:$0xff]
        %v268 = vld [vmem:[%s200 + $0x130] sm:$0xff]
        %v269 = vld [vmem:[%s200 + $0x138] sm:$0xff]
        %v270 = vld [vmem:[%s200 + $0x140] sm:$0xff]
        %v271 = vld [vmem:[%s200 + $0x148] sm:$0xff]
        %v272 = vld [vmem:[%s200 + $0x150] sm:$0xff]
        %v273 = vld [vmem:[%s200 + $0x158] sm:$0xff]
        %v274 = vld [vmem:[%s200 + $0x160] sm:$0xff]
        %v275 = vld [vmem:[%s200 + $0x168] sm:$0xff]
        %v276 = vld [vmem:[%s200 + $0x170] sm:$0xff]
        %v277 = vld [vmem:[%s200 + $0x178] sm:$0xff]
        %v278 = vld [vmem:[%s200 + $0x180] sm:$0xff]
        %v279 = vld [vmem:[%s200 + $0x188] sm:$0xff]
        %v280 = vld [vmem:[%s200 + $0x190] sm:$0xff]
        %v281 = vld [vmem:[%s200 + $0x198] sm:$0xff]
        %v282 = vld [vmem:[%s200 + $0x1a0] sm:$0xff]
        %v283 = vld [vmem:[%s200 + $0x1a8] sm:$0xff]
        %v284 = vld [vmem:[%s200 + $0x1b0] sm:$0xff]
        %v285 = vld [vmem:[%s200 + $0x1b8] sm:$0xff]
        %v286 = vld [vmem:[%s200 + $0x1c0] sm:$0xff]
        %v287 = vld [vmem:[%s200 + $0x1c8] sm:$0xff]
        %v288 = vld [vmem:[%s200 + $0x1d0] sm:$0xff]
        %v289 = vld [vmem:[%s200 + $0x1d8] sm:$0xff]
        %v290 = vld [vmem:[%s200 + $0x1e0] sm:$0xff]
        %v291 = vld [vmem:[%s200 + $0x1e8] sm:$0xff]
        %v292 = vld [vmem:[%s200 + $0x1f0] sm:$0xff]
        %v293 = vld [vmem:[%s200 + $0x1f8] sm:$0xff]
        %v294 = vld [vmem:[#allocation6] sm:$0xf]
        %v295 = vld [vmem:[#allocation6 + $0x4] sm:$0xf]
        %v296 = vld [vmem:[#allocation6 + $0x8] sm:$0xf]
        %v297 = vld [vmem:[#allocation6 + $0xc] sm:$0xf]
        %v298 = vld [vmem:[#allocation6 + $0x10] sm:$0xf]
        %v299 = vld [vmem:[#allocation6 + $0x14] sm:$0xf]
        %v300 = vld [vmem:[#allocation6 + $0x18] sm:$0xf]
        %v301 = vld [vmem:[#allocation6 + $0x1c] sm:$0xf]
        %v302 = vld [vmem:[#allocation6 + $0x20] sm:$0xf]
        %v303 = vld [vmem:[#allocation6 + $0x24] sm:$0xf]
        %v304 = vld [vmem:[#allocation6 + $0x28] sm:$0xf]
        %v305 = vld [vmem:[#allocation6 + $0x2c] sm:$0xf]
        %v306 = vld [vmem:[#allocation6 + $0x30] sm:$0xf]
        %v307 = vld [vmem:[#allocation6 + $0x34] sm:$0xf]
        %v308 = vld [vmem:[#allocation6 + $0x38] sm:$0xf]
        %v309 = vld [vmem:[#allocation6 + $0x3c] sm:$0xf]
        %v310 = vld [vmem:[#allocation6 + $0x40] sm:$0xf]
        %v311 = vld [vmem:[#allocation6 + $0x44] sm:$0xf]
        %v312 = vld [vmem:[#allocation6 + $0x48] sm:$0xf]
        %v313 = vld [vmem:[#allocation6 + $0x4c] sm:$0xf]
        %v314 = vld [vmem:[#allocation6 + $0x50] sm:$0xf]
        %v315 = vld [vmem:[#allocation6 + $0x54] sm:$0xf]
        %v316 = vld [vmem:[#allocation6 + $0x58] sm:$0xf]
        %v317 = vld [vmem:[#allocation6 + $0x5c] sm:$0xf]
        %v318 = vld [vmem:[#allocation6 + $0x60] sm:$0xf]
        %v319 = vld [vmem:[#allocation6 + $0x64] sm:$0xf]
        %v320 = vld [vmem:[#allocation6 + $0x68] sm:$0xf]
        %v321 = vld [vmem:[#allocation6 + $0x6c] sm:$0xf]
        %v322 = vld [vmem:[#allocation6 + $0x70] sm:$0xf]
        %v323 = vld [vmem:[#allocation6 + $0x74] sm:$0xf]
        %v324 = vld [vmem:[#allocation6 + $0x78] sm:$0xf]
        %v325 = vld [vmem:[#allocation6 + $0x7c] sm:$0xf]
        %v326 = vld [vmem:[#allocation6 + $0x80] sm:$0xf]
        %v327 = vld [vmem:[#allocation6 + $0x84] sm:$0xf]
        %v328 = vld [vmem:[#allocation6 + $0x88] sm:$0xf]
        %v329 = vld [vmem:[#allocation6 + $0x8c] sm:$0xf]
        %v330 = vld [vmem:[#allocation6 + $0x90] sm:$0xf]
        %v331 = vld [vmem:[#allocation6 + $0x94] sm:$0xf]
        %v332 = vld [vmem:[#allocation6 + $0x98] sm:$0xf]
        %v333 = vld [vmem:[#allocation6 + $0x9c] sm:$0xf]
        %v334 = vld [vmem:[#allocation6 + $0xa0] sm:$0xf]
        %v335 = vld [vmem:[#allocation6 + $0xa4] sm:$0xf]
        %v336 = vld [vmem:[#allocation6 + $0xa8] sm:$0xf]
        %v337 = vld [vmem:[#allocation6 + $0xac] sm:$0xf]
        %v338 = vld [vmem:[#allocation6 + $0xb0] sm:$0xf]
        %v339 = vld [vmem:[#allocation6 + $0xb4] sm:$0xf]
        %v340 = vld [vmem:[#allocation6 + $0xb8] sm:$0xf]
        %v341 = vld [vmem:[#allocation6 + $0xbc] sm:$0xf]
        %v342 = vld [vmem:[#allocation6 + $0xc0] sm:$0xf]
        %v343 = vld [vmem:[#allocation6 + $0xc4] sm:$0xf]
        %v344 = vld [vmem:[#allocation6 + $0xc8] sm:$0xf]
        %v345 = vld [vmem:[#allocation6 + $0xcc] sm:$0xf]
        %v346 = vld [vmem:[#allocation6 + $0xd0] sm:$0xf]
        %v347 = vld [vmem:[#allocation6 + $0xd4] sm:$0xf]
        %v348 = vld [vmem:[#allocation6 + $0xd8] sm:$0xf]
        %v349 = vld [vmem:[#allocation6 + $0xdc] sm:$0xf]
        %v350 = vld [vmem:[#allocation6 + $0xe0] sm:$0xf]
        %v351 = vld [vmem:[#allocation6 + $0xe4] sm:$0xf]
        %v352 = vld [vmem:[#allocation6 + $0xe8] sm:$0xf]
        %v353 = vld [vmem:[#allocation6 + $0xec] sm:$0xf]
        %v354 = vld [vmem:[#allocation6 + $0xf0] sm:$0xf]
        %v355 = vld [vmem:[#allocation6 + $0xf4] sm:$0xf]
        %v356 = vld [vmem:[#allocation6 + $0xf8] sm:$0xf]
        %v357 = vld [vmem:[#allocation6 + $0xfc] sm:$0xf]
        %v358 = vld [vmem:[#allocation6 + $0x100] sm:$0xf]
        %v359 = vld [vmem:[#allocation6 + $0x104] sm:$0xf]
        %v360 = vld [vmem:[#allocation6 + $0x108] sm:$0xf]
        %v361 = vld [vmem:[#allocation6 + $0x10c] sm:$0xf]
        %v362 = vld [vmem:[#allocation6 + $0x110] sm:$0xf]
        %v363 = vld [vmem:[#allocation6 + $0x114] sm:$0xf]
        %v364 = vld [vmem:[#allocation6 + $0x118] sm:$0xf]
        %v365 = vld [vmem:[#allocation6 + $0x11c] sm:$0xf]
        %v366 = vld [vmem:[#allocation6 + $0x120] sm:$0xf]
        %v367 = vld [vmem:[#allocation6 + $0x124] sm:$0xf]
        %v368 = vld [vmem:[#allocation6 + $0x128] sm:$0xf]
        %v369 = vld [vmem:[#allocation6 + $0x12c] sm:$0xf]
        %v370 = vld [vmem:[#allocation6 + $0x130] sm:$0xf]
        %v371 = vld [vmem:[#allocation6 + $0x134] sm:$0xf]
        %v372 = vld [vmem:[#allocation6 + $0x138] sm:$0xf]
        %v373 = vld [vmem:[#allocation6 + $0x13c] sm:$0xf]
        %v374 = vld [vmem:[#allocation6 + $0x140] sm:$0xf]
        %v375 = vld [vmem:[#allocation6 + $0x144] sm:$0xf]
        %v376 = vld [vmem:[#allocation6 + $0x148] sm:$0xf]
        %v377 = vld [vmem:[#allocation6 + $0x14c] sm:$0xf]
        %v378 = vld [vmem:[#allocation6 + $0x150] sm:$0xf]
        %v379 = vld [vmem:[#allocation6 + $0x154] sm:$0xf]
        %v380 = vld [vmem:[#allocation6 + $0x158] sm:$0xf]
        %v381 = vld [vmem:[#allocation6 + $0x15c] sm:$0xf]
        %v382 = vld [vmem:[#allocation6 + $0x160] sm:$0xf]
        %v383 = vld [vmem:[#allocation6 + $0x164] sm:$0xf]
        %v384 = vld [vmem:[#allocation6 + $0x168] sm:$0xf]
        %v385 = vld [vmem:[#allocation6 + $0x16c] sm:$0xf]
        %v386 = vld [vmem:[#allocation6 + $0x170] sm:$0xf]
        %v387 = vld [vmem:[#allocation6 + $0x174] sm:$0xf]
        %v388 = vld [vmem:[#allocation6 + $0x178] sm:$0xf]
        %v389 = vld [vmem:[#allocation6 + $0x17c] sm:$0xf]
        %v390 = vld [vmem:[#allocation6 + $0x180] sm:$0xf]
        %v391 = vld [vmem:[#allocation6 + $0x184] sm:$0xf]
        %v392 = vld [vmem:[#allocation6 + $0x188] sm:$0xf]
        %v393 = vld [vmem:[#allocation6 + $0x18c] sm:$0xf]
        %v394 = vld [vmem:[#allocation6 + $0x190] sm:$0xf]
        %v395 = vld [vmem:[#allocation6 + $0x194] sm:$0xf]
        %v396 = vld [vmem:[#allocation6 + $0x198] sm:$0xf]
        %v397 = vld [vmem:[#allocation6 + $0x19c] sm:$0xf]
        %v398 = vld [vmem:[#allocation6 + $0x1a0] sm:$0xf]
        %v399 = vld [vmem:[#allocation6 + $0x1a4] sm:$0xf]
        %v400 = vld [vmem:[#allocation6 + $0x1a8] sm:$0xf]
        %v401 = vld [vmem:[#allocation6 + $0x1ac] sm:$0xf]
        %v402 = vld [vmem:[#allocation6 + $0x1b0] sm:$0xf]
        %v403 = vld [vmem:[#allocation6 + $0x1b4] sm:$0xf]
        %v404 = vld [vmem:[#allocation6 + $0x1b8] sm:$0xf]
        %v405 = vld [vmem:[#allocation6 + $0x1bc] sm:$0xf]
        %v406 = vld [vmem:[#allocation6 + $0x1c0] sm:$0xf]
        %v407 = vld [vmem:[#allocation6 + $0x1c4] sm:$0xf]
        %v408 = vld [vmem:[#allocation6 + $0x1c8] sm:$0xf]
        %v409 = vld [vmem:[#allocation6 + $0x1cc] sm:$0xf]
        %v410 = vld [vmem:[#allocation6 + $0x1d0] sm:$0xf]
        %v411 = vld [vmem:[#allocation6 + $0x1d4] sm:$0xf]
        %v412 = vld [vmem:[#allocation6 + $0x1d8] sm:$0xf]
        %v413 = vld [vmem:[#allocation6 + $0x1dc] sm:$0xf]
        %v414 = vld [vmem:[#allocation6 + $0x1e0] sm:$0xf]
        %v415 = vld [vmem:[#allocation6 + $0x1e4] sm:$0xf]
        %v416 = vld [vmem:[#allocation6 + $0x1e8] sm:$0xf]
        %v417 = vld [vmem:[#allocation6 + $0x1ec] sm:$0xf]
        %v418 = vld [vmem:[#allocation6 + $0x1f0] sm:$0xf]
        %v419 = vld [vmem:[#allocation6 + $0x1f4] sm:$0xf]
        %v420 = vld [vmem:[#allocation6 + $0x1f8] sm:$0xf]
        %v421 = vld [vmem:[#allocation6 + $0x1fc] sm:$0xf]
        %v486 = vunpack.c.l.b16 %v230
        %v487 = vunpack.c.h.b16 %v230
        %v488 = vunpack.c.l.b16 %v231
        %v489 = vunpack.c.h.b16 %v231
        %v490 = vunpack.c.l.b16 %v232
        %v491 = vunpack.c.h.b16 %v232
        %v492 = vunpack.c.l.b16 %v233
        %v493 = vunpack.c.h.b16 %v233
        %v494 = vunpack.c.l.b16 %v234
        %v495 = vunpack.c.h.b16 %v234
        %v496 = vunpack.c.l.b16 %v235
        %v497 = vunpack.c.h.b16 %v235
        %v498 = vunpack.c.l.b16 %v236
        %v499 = vunpack.c.h.b16 %v236
        %v500 = vunpack.c.l.b16 %v237
        %v501 = vunpack.c.h.b16 %v237
        %v502 = vunpack.c.l.b16 %v238
        %v503 = vunpack.c.h.b16 %v238
        %v504 = vunpack.c.l.b16 %v239
        %v505 = vunpack.c.h.b16 %v239
        %v506 = vunpack.c.l.b16 %v240
        %v507 = vunpack.c.h.b16 %v240
        %v508 = vunpack.c.l.b16 %v241
        %v509 = vunpack.c.h.b16 %v241
        %v510 = vunpack.c.l.b16 %v242
        %v511 = vunpack.c.h.b16 %v242
        %v512 = vunpack.c.l.b16 %v243
        %v513 = vunpack.c.h.b16 %v243
        %v514 = vunpack.c.l.b16 %v244
        %v515 = vunpack.c.h.b16 %v244
        %v516 = vunpack.c.l.b16 %v245
        %v517 = vunpack.c.h.b16 %v245
        %v518 = vunpack.c.l.b16 %v246
        %v519 = vunpack.c.h.b16 %v246
        %v520 = vunpack.c.l.b16 %v247
        %v521 = vunpack.c.h.b16 %v247
        %v522 = vunpack.c.l.b16 %v248
        %v523 = vunpack.c.h.b16 %v248
        %v524 = vunpack.c.l.b16 %v249
        %v525 = vunpack.c.h.b16 %v249
        %v526 = vunpack.c.l.b16 %v250
        %v527 = vunpack.c.h.b16 %v250
        %v528 = vunpack.c.l.b16 %v251
        %v529 = vunpack.c.h.b16 %v251
        %v530 = vunpack.c.l.b16 %v252
        %v531 = vunpack.c.h.b16 %v252
        %v532 = vunpack.c.l.b16 %v253
        %v533 = vunpack.c.h.b16 %v253
        %v534 = vunpack.c.l.b16 %v254
        %v535 = vunpack.c.h.b16 %v254
        %v536 = vunpack.c.l.b16 %v255
        %v537 = vunpack.c.h.b16 %v255
        %v538 = vunpack.c.l.b16 %v256
        %v539 = vunpack.c.h.b16 %v256
        %v540 = vunpack.c.l.b16 %v257
        %v541 = vunpack.c.h.b16 %v257
        %v542 = vunpack.c.l.b16 %v258
        %v543 = vunpack.c.h.b16 %v258
        %v544 = vunpack.c.l.b16 %v259
        %v545 = vunpack.c.h.b16 %v259
        %v546 = vunpack.c.l.b16 %v260
        %v547 = vunpack.c.h.b16 %v260
        %v548 = vunpack.c.l.b16 %v261
        %v549 = vunpack.c.h.b16 %v261
        %v550 = vunpack.c.l.b16 %v262
        %v551 = vunpack.c.h.b16 %v262
        %v552 = vunpack.c.l.b16 %v263
        %v553 = vunpack.c.h.b16 %v263
        %v554 = vunpack.c.l.b16 %v264
        %v555 = vunpack.c.h.b16 %v264
        %v556 = vunpack.c.l.b16 %v265
        %v557 = vunpack.c.h.b16 %v265
        %v558 = vunpack.c.l.b16 %v266
        %v559 = vunpack.c.h.b16 %v266
        %v560 = vunpack.c.l.b16 %v267
        %v561 = vunpack.c.h.b16 %v267
        %v562 = vunpack.c.l.b16 %v268
        %v563 = vunpack.c.h.b16 %v268
        %v564 = vunpack.c.l.b16 %v269
        %v565 = vunpack.c.h.b16 %v269
        %v566 = vunpack.c.l.b16 %v270
        %v567 = vunpack.c.h.b16 %v270
        %v568 = vunpack.c.l.b16 %v271
        %v569 = vunpack.c.h.b16 %v271
        %v570 = vunpack.c.l.b16 %v272
        %v571 = vunpack.c.h.b16 %v272
        %v572 = vunpack.c.l.b16 %v273
        %v573 = vunpack.c.h.b16 %v273
        %v574 = vunpack.c.l.b16 %v274
        %v575 = vunpack.c.h.b16 %v274
        %v576 = vunpack.c.l.b16 %v275
        %v577 = vunpack.c.h.b16 %v275
        %v578 = vunpack.c.l.b16 %v276
        %v579 = vunpack.c.h.b16 %v276
        %v580 = vunpack.c.l.b16 %v277
        %v581 = vunpack.c.h.b16 %v277
        %v582 = vunpack.c.l.b16 %v278
        %v583 = vunpack.c.h.b16 %v278
        %v584 = vunpack.c.l.b16 %v279
        %v585 = vunpack.c.h.b16 %v279
        %v586 = vunpack.c.l.b16 %v280
        %v587 = vunpack.c.h.b16 %v280
        %v588 = vunpack.c.l.b16 %v281
        %v589 = vunpack.c.h.b16 %v281
        %v590 = vunpack.c.l.b16 %v282
        %v591 = vunpack.c.h.b16 %v282
        %v592 = vunpack.c.l.b16 %v283
        %v593 = vunpack.c.h.b16 %v283
        %v594 = vunpack.c.l.b16 %v284
        %v595 = vunpack.c.h.b16 %v284
        %v596 = vunpack.c.l.b16 %v285
        %v597 = vunpack.c.h.b16 %v285
        %v598 = vunpack.c.l.b16 %v286
        %v599 = vunpack.c.h.b16 %v286
        %v600 = vunpack.c.l.b16 %v287
        %v601 = vunpack.c.h.b16 %v287
        %v602 = vunpack.c.l.b16 %v288
        %v603 = vunpack.c.h.b16 %v288
        %v604 = vunpack.c.l.b16 %v289
        %v605 = vunpack.c.h.b16 %v289
        %v606 = vunpack.c.l.b16 %v290
        %v607 = vunpack.c.h.b16 %v290
        %v608 = vunpack.c.l.b16 %v291
        %v609 = vunpack.c.h.b16 %v291
        %v610 = vunpack.c.l.b16 %v292
        %v611 = vunpack.c.h.b16 %v292
        %v612 = vunpack.c.l.b16 %v293
        %v613 = vunpack.c.h.b16 %v293
        %v614 = vpack.c.b16 %v494, %v486
        %v615 = vpack.c.b16 %v495, %v487
        %v616 = vpack.c.b16 %v496, %v488
        %v617 = vpack.c.b16 %v497, %v489
        %v618 = vpack.c.b16 %v498, %v490
        %v619 = vpack.c.b16 %v499, %v491
        %v620 = vpack.c.b16 %v500, %v492
        %v621 = vpack.c.b16 %v501, %v493
        %v622 = vpack.c.b16 %v510, %v502
        %v623 = vpack.c.b16 %v511, %v503
        %v624 = vpack.c.b16 %v512, %v504
        %v625 = vpack.c.b16 %v513, %v505
        %v626 = vpack.c.b16 %v514, %v506
        %v627 = vpack.c.b16 %v515, %v507
        %v628 = vpack.c.b16 %v516, %v508
        %v629 = vpack.c.b16 %v517, %v509
        %v630 = vpack.c.b16 %v526, %v518
        %v631 = vpack.c.b16 %v527, %v519
        %v632 = vpack.c.b16 %v528, %v520
        %v633 = vpack.c.b16 %v529, %v521
        %v634 = vpack.c.b16 %v530, %v522
        %v635 = vpack.c.b16 %v531, %v523
        %v636 = vpack.c.b16 %v532, %v524
        %v637 = vpack.c.b16 %v533, %v525
        %v638 = vpack.c.b16 %v542, %v534
        %v639 = vpack.c.b16 %v543, %v535
        %v640 = vpack.c.b16 %v544, %v536
        %v641 = vpack.c.b16 %v545, %v537
        %v642 = vpack.c.b16 %v546, %v538
        %v643 = vpack.c.b16 %v547, %v539
        %v644 = vpack.c.b16 %v548, %v540
        %v645 = vpack.c.b16 %v549, %v541
        %v646 = vpack.c.b16 %v558, %v550
        %v647 = vpack.c.b16 %v559, %v551
        %v648 = vpack.c.b16 %v560, %v552
        %v649 = vpack.c.b16 %v561, %v553
        %v650 = vpack.c.b16 %v562, %v554
        %v651 = vpack.c.b16 %v563, %v555
        %v652 = vpack.c.b16 %v564, %v556
        %v653 = vpack.c.b16 %v565, %v557
        %v654 = vpack.c.b16 %v574, %v566
        %v655 = vpack.c.b16 %v575, %v567
        %v656 = vpack.c.b16 %v576, %v568
        %v657 = vpack.c.b16 %v577, %v569
        %v658 = vpack.c.b16 %v578, %v570
        %v659 = vpack.c.b16 %v579, %v571
        %v660 = vpack.c.b16 %v580, %v572
        %v661 = vpack.c.b16 %v581, %v573
        %v662 = vpack.c.b16 %v590, %v582
        %v663 = vpack.c.b16 %v591, %v583
        %v664 = vpack.c.b16 %v592, %v584
        %v665 = vpack.c.b16 %v593, %v585
        %v666 = vpack.c.b16 %v594, %v586
        %v667 = vpack.c.b16 %v595, %v587
        %v668 = vpack.c.b16 %v596, %v588
        %v669 = vpack.c.b16 %v597, %v589
        %v670 = vpack.c.b16 %v606, %v598
        %v671 = vpack.c.b16 %v607, %v599
        %v672 = vpack.c.b16 %v608, %v600
        %v673 = vpack.c.b16 %v609, %v601
        %v674 = vpack.c.b16 %v610, %v602
        %v675 = vpack.c.b16 %v611, %v603
        %v676 = vpack.c.b16 %v612, %v604
        %v677 = vpack.c.b16 %v613, %v605
        %v870 = vunpack.c.l.b16 %v294
        %v871 = vunpack.c.l.b16 %v295
        %v872 = vunpack.c.l.b16 %v296
        %v873 = vunpack.c.l.b16 %v297
        %v874 = vunpack.c.l.b16 %v298
        %v875 = vunpack.c.l.b16 %v299
        %v876 = vunpack.c.l.b16 %v300
        %v877 = vunpack.c.l.b16 %v301
        %v878 = vunpack.c.l.b16 %v302
        %v879 = vunpack.c.l.b16 %v303
        %v880 = vunpack.c.l.b16 %v304
        %v881 = vunpack.c.l.b16 %v305
        %v882 = vunpack.c.l.b16 %v306
        %v883 = vunpack.c.l.b16 %v307
        %v884 = vunpack.c.l.b16 %v308
        %v885 = vunpack.c.l.b16 %v309
        %v886 = vunpack.c.l.b16 %v310
        %v887 = vunpack.c.l.b16 %v311
        %v888 = vunpack.c.l.b16 %v312
        %v889 = vunpack.c.l.b16 %v313
        %v890 = vunpack.c.l.b16 %v314
        %v891 = vunpack.c.l.b16 %v315
        %v892 = vunpack.c.l.b16 %v316
        %v893 = vunpack.c.l.b16 %v317
        %v894 = vunpack.c.l.b16 %v318
        %v895 = vunpack.c.l.b16 %v319
        %v896 = vunpack.c.l.b16 %v320
        %v897 = vunpack.c.l.b16 %v321
        %v898 = vunpack.c.l.b16 %v322
        %v899 = vunpack.c.l.b16 %v323
        %v900 = vunpack.c.l.b16 %v324
        %v901 = vunpack.c.l.b16 %v325
        %v902 = vunpack.c.l.b16 %v326
        %v903 = vunpack.c.l.b16 %v327
        %v904 = vunpack.c.l.b16 %v328
        %v905 = vunpack.c.l.b16 %v329
        %v906 = vunpack.c.l.b16 %v330
        %v907 = vunpack.c.l.b16 %v331
        %v908 = vunpack.c.l.b16 %v332
        %v909 = vunpack.c.l.b16 %v333
        %v910 = vunpack.c.l.b16 %v334
        %v911 = vunpack.c.l.b16 %v335
        %v912 = vunpack.c.l.b16 %v336
        %v913 = vunpack.c.l.b16 %v337
        %v914 = vunpack.c.l.b16 %v338
        %v915 = vunpack.c.l.b16 %v339
        %v916 = vunpack.c.l.b16 %v340
        %v917 = vunpack.c.l.b16 %v341
        %v918 = vunpack.c.l.b16 %v342
        %v919 = vunpack.c.l.b16 %v343
        %v920 = vunpack.c.l.b16 %v344
        %v921 = vunpack.c.l.b16 %v345
        %v922 = vunpack.c.l.b16 %v346
        %v923 = vunpack.c.l.b16 %v347
        %v924 = vunpack.c.l.b16 %v348
        %v925 = vunpack.c.l.b16 %v349
        %v926 = vunpack.c.l.b16 %v350
        %v927 = vunpack.c.l.b16 %v351
        %v928 = vunpack.c.l.b16 %v352
        %v929 = vunpack.c.l.b16 %v353
        %v930 = vunpack.c.l.b16 %v354
        %v931 = vunpack.c.l.b16 %v355
        %v932 = vunpack.c.l.b16 %v356
        %v933 = vunpack.c.l.b16 %v357
        %v934 = vunpack.c.l.b16 %v358
        %v935 = vunpack.c.l.b16 %v359
        %v936 = vunpack.c.l.b16 %v360
        %v937 = vunpack.c.l.b16 %v361
        %v938 = vunpack.c.l.b16 %v362
        %v939 = vunpack.c.l.b16 %v363
        %v940 = vunpack.c.l.b16 %v364
        %v941 = vunpack.c.l.b16 %v365
        %v942 = vunpack.c.l.b16 %v366
        %v943 = vunpack.c.l.b16 %v367
        %v944 = vunpack.c.l.b16 %v368
        %v945 = vunpack.c.l.b16 %v369
        %v946 = vunpack.c.l.b16 %v370
        %v947 = vunpack.c.l.b16 %v371
        %v948 = vunpack.c.l.b16 %v372
        %v949 = vunpack.c.l.b16 %v373
        %v950 = vunpack.c.l.b16 %v374
        %v951 = vunpack.c.l.b16 %v375
        %v952 = vunpack.c.l.b16 %v376
        %v953 = vunpack.c.l.b16 %v377
        %v954 = vunpack.c.l.b16 %v378
        %v955 = vunpack.c.l.b16 %v379
        %v956 = vunpack.c.l.b16 %v380
        %v957 = vunpack.c.l.b16 %v381
        %v958 = vunpack.c.l.b16 %v382
        %v959 = vunpack.c.l.b16 %v383
        %v960 = vunpack.c.l.b16 %v384
        %v961 = vunpack.c.l.b16 %v385
        %v962 = vunpack.c.l.b16 %v386
        %v963 = vunpack.c.l.b16 %v387
        %v964 = vunpack.c.l.b16 %v388
        %v965 = vunpack.c.l.b16 %v389
        %v966 = vunpack.c.l.b16 %v390
        %v967 = vunpack.c.l.b16 %v391
        %v968 = vunpack.c.l.b16 %v392
        %v969 = vunpack.c.l.b16 %v393
        %v970 = vunpack.c.l.b16 %v394
        %v971 = vunpack.c.l.b16 %v395
        %v972 = vunpack.c.l.b16 %v396
        %v973 = vunpack.c.l.b16 %v397
        %v974 = vunpack.c.l.b16 %v398
        %v975 = vunpack.c.l.b16 %v399
        %v976 = vunpack.c.l.b16 %v400
        %v977 = vunpack.c.l.b16 %v401
        %v978 = vunpack.c.l.b16 %v402
        %v979 = vunpack.c.l.b16 %v403
        %v980 = vunpack.c.l.b16 %v404
        %v981 = vunpack.c.l.b16 %v405
        %v982 = vunpack.c.l.b16 %v406
        %v983 = vunpack.c.l.b16 %v407
        %v984 = vunpack.c.l.b16 %v408
        %v985 = vunpack.c.l.b16 %v409
        %v986 = vunpack.c.l.b16 %v410
        %v987 = vunpack.c.l.b16 %v411
        %v988 = vunpack.c.l.b16 %v412
        %v989 = vunpack.c.l.b16 %v413
        %v990 = vunpack.c.l.b16 %v414
        %v991 = vunpack.c.l.b16 %v415
        %v992 = vunpack.c.l.b16 %v416
        %v993 = vunpack.c.l.b16 %v417
        %v994 = vunpack.c.l.b16 %v418
        %v995 = vunpack.c.l.b16 %v419
        %v996 = vunpack.c.l.b16 %v420
        %v997 = vunpack.c.l.b16 %v421
        %v998 = vpack.c.b16 %v871, %v870
        %v999 = vpack.c.b16 %v873, %v872
        %v1000 = vpack.c.b16 %v875, %v874
        %v1001 = vpack.c.b16 %v877, %v876
        %v1002 = vpack.c.b16 %v879, %v878
        %v1003 = vpack.c.b16 %v881, %v880
        %v1004 = vpack.c.b16 %v883, %v882
        %v1005 = vpack.c.b16 %v885, %v884
        %v1006 = vpack.c.b16 %v887, %v886
        %v1007 = vpack.c.b16 %v889, %v888
        %v1008 = vpack.c.b16 %v891, %v890
        %v1009 = vpack.c.b16 %v893, %v892
        %v1010 = vpack.c.b16 %v895, %v894
        %v1011 = vpack.c.b16 %v897, %v896
        %v1012 = vpack.c.b16 %v899, %v898
        %v1013 = vpack.c.b16 %v901, %v900
        %v1014 = vpack.c.b16 %v903, %v902
        %v1015 = vpack.c.b16 %v905, %v904
        %v1016 = vpack.c.b16 %v907, %v906
        %v1017 = vpack.c.b16 %v909, %v908
        %v1018 = vpack.c.b16 %v911, %v910
        %v1019 = vpack.c.b16 %v913, %v912
        %v1020 = vpack.c.b16 %v915, %v914
        %v1021 = vpack.c.b16 %v917, %v916
        %v1022 = vpack.c.b16 %v919, %v918
        %v1023 = vpack.c.b16 %v921, %v920
        %v1024 = vpack.c.b16 %v923, %v922
        %v1025 = vpack.c.b16 %v925, %v924
        %v1026 = vpack.c.b16 %v927, %v926
        %v1027 = vpack.c.b16 %v929, %v928
        %v1028 = vpack.c.b16 %v931, %v930
        %v1029 = vpack.c.b16 %v933, %v932
        %v1030 = vpack.c.b16 %v935, %v934
        %v1031 = vpack.c.b16 %v937, %v936
        %v1032 = vpack.c.b16 %v939, %v938
        %v1033 = vpack.c.b16 %v941, %v940
        %v1034 = vpack.c.b16 %v943, %v942
        %v1035 = vpack.c.b16 %v945, %v944
        %v1036 = vpack.c.b16 %v947, %v946
        %v1037 = vpack.c.b16 %v949, %v948
        %v1038 = vpack.c.b16 %v951, %v950
        %v1039 = vpack.c.b16 %v953, %v952
        %v1040 = vpack.c.b16 %v955, %v954
        %v1041 = vpack.c.b16 %v957, %v956
        %v1042 = vpack.c.b16 %v959, %v958
        %v1043 = vpack.c.b16 %v961, %v960
        %v1044 = vpack.c.b16 %v963, %v962
        %v1045 = vpack.c.b16 %v965, %v964
        %v1046 = vpack.c.b16 %v967, %v966
        %v1047 = vpack.c.b16 %v969, %v968
        %v1048 = vpack.c.b16 %v971, %v970
        %v1049 = vpack.c.b16 %v973, %v972
        %v1050 = vpack.c.b16 %v975, %v974
        %v1051 = vpack.c.b16 %v977, %v976
        %v1052 = vpack.c.b16 %v979, %v978
        %v1053 = vpack.c.b16 %v981, %v980
        %v1054 = vpack.c.b16 %v983, %v982
        %v1055 = vpack.c.b16 %v985, %v984
        %v1056 = vpack.c.b16 %v987, %v986
        %v1057 = vpack.c.b16 %v989, %v988
        %v1058 = vpack.c.b16 %v991, %v990
        %v1059 = vpack.c.b16 %v993, %v992
        %v1060 = vpack.c.b16 %v995, %v994
        %v1061 = vpack.c.b16 %v997, %v996
        %1126 = vmatprep.subr.bf16.mxu0 0
        %1127 = vmatpush1.bf16.msra.mxu0 %v1005
        %1128 = vmatprep.subr.bf16.mxu0 0
        %1129 = vmatpush1.bf16.msra.mxu0 %v1004
        %1130 = vmatprep.subr.bf16.mxu0 0
        %1131 = vmatpush1.bf16.msra.mxu0 %v1003
        %1132 = vmatprep.subr.bf16.mxu0 0
        %1133 = vmatpush1.bf16.msra.mxu0 %v1002
        %1134 = vmatprep.subr.bf16.mxu0 0
        %1135 = vmatpush1.bf16.msra.mxu0 %v1001
        %1136 = vmatprep.subr.bf16.mxu0 0
        %1137 = vmatpush1.bf16.msra.mxu0 %v1000
        %1138 = vmatprep.subr.bf16.mxu0 0
        %1139 = vmatpush1.bf16.msra.mxu0 %v999
        %1140 = vmatprep.subr.bf16.mxu0 0
        %1141 = vmatpush1.bf16.msra.mxu0 %v998
        %1142 = vmatprep.subr.bf16.mxu0 0
        %1143 = vmatpush2.bf16.msra.mxu0 %v1013
        %1144 = vmatprep.subr.bf16.mxu0 0
        %1145 = vmatpush2.bf16.msra.mxu0 %v1012
        %1146 = vmatprep.subr.bf16.mxu0 0
        %1147 = vmatpush2.bf16.msra.mxu0 %v1011
        %1148 = vmatprep.subr.bf16.mxu0 0
        %1149 = vmatpush2.bf16.msra.mxu0 %v1010
        %1150 = vmatprep.subr.bf16.mxu0 0
        %1151 = vmatpush2.bf16.msra.mxu0 %v1009
        %1152 = vmatprep.subr.bf16.mxu0 0
        %1153 = vmatpush2.bf16.msra.mxu0 %v1008
        %1154 = vmatprep.subr.bf16.mxu0 0
        %1155 = vmatpush2.bf16.msra.mxu0 %v1007
        %1156 = vmatprep.subr.bf16.mxu0 0
        %1157 = vmatpush2.bf16.msra.mxu0 %v1006
        %1158 = vmatprep.mubr.bf16.mxu0 %v615
        %1159 = vmatmul.mubr.bf16.gmra.mxu0 %v614
        %v1160 = vpop.f32.mrf.mxu0
        %v1161 = vadd.f32 0.0, %v1160
        %v1162 = vpop.f32.mrf.mxu0
        %v1163 = vpop.f32.mrf.mxu0
        %v1164 = vadd.f32 0.0, %v1163
        %v1165 = vpop.f32.mrf.mxu0
        %1166 = vmatprep.mubr.bf16.mxu0 %v623
        %1167 = vmatmul.mubr.bf16.gmra.mxu0 %v622
        %v1168 = vpop.f32.mrf.mxu0
        %v1169 = vadd.f32 0.0, %v1168
        %v1170 = vpop.f32.mrf.mxu0
        %v1171 = vpop.f32.mrf.mxu0
        %v1172 = vadd.f32 0.0, %v1171
        %v1173 = vpop.f32.mrf.mxu0
        %1174 = vmatprep.mubr.bf16.mxu0 %v631
        %1175 = vmatmul.mubr.bf16.gmra.mxu0 %v630
        %v1176 = vpop.f32.mrf.mxu0
        %v1177 = vadd.f32 0.0, %v1176
        %v1178 = vpop.f32.mrf.mxu0
        %v1179 = vpop.f32.mrf.mxu0
        %v1180 = vadd.f32 0.0, %v1179
        %v1181 = vpop.f32.mrf.mxu0
        %1182 = vmatprep.mubr.bf16.mxu0 %v639
        %1183 = vmatmul.mubr.bf16.gmra.mxu0 %v638
        %v1184 = vpop.f32.mrf.mxu0
        %v1185 = vadd.f32 0.0, %v1184
        %v1186 = vpop.f32.mrf.mxu0
        %v1187 = vpop.f32.mrf.mxu0
        %v1188 = vadd.f32 0.0, %v1187
        %v1189 = vpop.f32.mrf.mxu0
        %1190 = vmatprep.mubr.bf16.mxu0 %v647
        %1191 = vmatmul.mubr.bf16.gmra.mxu0 %v646
        %v1192 = vpop.f32.mrf.mxu0
        %v1193 = vadd.f32 0.0, %v1192
        %v1194 = vpop.f32.mrf.mxu0
        %v1195 = vpop.f32.mrf.mxu0
        %v1196 = vadd.f32 0.0, %v1195
        %v1197 = vpop.f32.mrf.mxu0
        %1198 = vmatprep.mubr.bf16.mxu0 %v655
        %1199 = vmatmul.mubr.bf16.gmra.mxu0 %v654
        %v1200 = vpop.f32.mrf.mxu0
        %v1201 = vadd.f32 0.0, %v1200
        %v1202 = vpop.f32.mrf.mxu0
        %v1203 = vpop.f32.mrf.mxu0
        %v1204 = vadd.f32 0.0, %v1203
        %v1205 = vpop.f32.mrf.mxu0
        %1206 = vmatprep.mubr.bf16.mxu0 %v663
        %1207 = vmatmul.mubr.bf16.gmra.mxu0 %v662
        %v1208 = vpop.f32.mrf.mxu0
        %v1209 = vadd.f32 0.0, %v1208
        %v1210 = vpop.f32.mrf.mxu0
        %v1211 = vpop.f32.mrf.mxu0
        %v1212 = vadd.f32 0.0, %v1211
        %v1213 = vpop.f32.mrf.mxu0
        %1214 = vmatprep.mubr.bf16.mxu0 %v671
        %1215 = vmatmul.mubr.bf16.gmra.mxu0 %v670
        %v1216 = vpop.f32.mrf.mxu0
        %v1217 = vadd.f32 0.0, %v1216
        %v1218 = vpop.f32.mrf.mxu0
        %v1219 = vpop.f32.mrf.mxu0
        %v1220 = vadd.f32 0.0, %v1219
        %v1221 = vpop.f32.mrf.mxu0
        %1222 = vdwg.mxu0
        %1223 = vmatprep.subr.bf16.mxu0 0
        %1224 = vmatpush1.bf16.msra.mxu0 %v1021
        %1225 = vmatprep.subr.bf16.mxu0 0
        %1226 = vmatpush1.bf16.msra.mxu0 %v1020
        %1227 = vmatprep.subr.bf16.mxu0 0
        %1228 = vmatpush1.bf16.msra.mxu0 %v1019
        %1229 = vmatprep.subr.bf16.mxu0 0
        %1230 = vmatpush1.bf16.msra.mxu0 %v1018
        %1231 = vmatprep.subr.bf16.mxu0 0
        %1232 = vmatpush1.bf16.msra.mxu0 %v1017
        %1233 = vmatprep.subr.bf16.mxu0 0
        %1234 = vmatpush1.bf16.msra.mxu0 %v1016
        %1235 = vmatprep.subr.bf16.mxu0 0
        %1236 = vmatpush1.bf16.msra.mxu0 %v1015
        %1237 = vmatprep.subr.bf16.mxu0 0
        %1238 = vmatpush1.bf16.msra.mxu0 %v1014
        %1239 = vmatprep.subr.bf16.mxu0 0
        %1240 = vmatpush2.bf16.msra.mxu0 %v1029
        %1241 = vmatprep.subr.bf16.mxu0 0
        %1242 = vmatpush2.bf16.msra.mxu0 %v1028
        %1243 = vmatprep.subr.bf16.mxu0 0
        %1244 = vmatpush2.bf16.msra.mxu0 %v1027
        %1245 = vmatprep.subr.bf16.mxu0 0
        %1246 = vmatpush2.bf16.msra.mxu0 %v1026
        %1247 = vmatprep.subr.bf16.mxu0 0
        %1248 = vmatpush2.bf16.msra.mxu0 %v1025
        %1249 = vmatprep.subr.bf16.mxu0 0
        %1250 = vmatpush2.bf16.msra.mxu0 %v1024
        %1251 = vmatprep.subr.bf16.mxu0 0
        %1252 = vmatpush2.bf16.msra.mxu0 %v1023
        %1253 = vmatprep.subr.bf16.mxu0 0
        %1254 = vmatpush2.bf16.msra.mxu0 %v1022
        %1255 = vmatprep.mubr.bf16.mxu0 %v617
        %1256 = vmatmul.mubr.bf16.gmra.mxu0 %v616
        %v1257 = vpop.f32.mrf.mxu0
        %v1258 = vadd.f32 %v1161, %v1257
        %v1259 = vpop.f32.mrf.mxu0
        %v1260 = vpop.f32.mrf.mxu0
        %v1261 = vadd.f32 %v1164, %v1260
        %v1262 = vpop.f32.mrf.mxu0
        %1263 = vmatprep.mubr.bf16.mxu0 %v625
        %1264 = vmatmul.mubr.bf16.gmra.mxu0 %v624
        %v1265 = vpop.f32.mrf.mxu0
        %v1266 = vadd.f32 %v1169, %v1265
        %v1267 = vpop.f32.mrf.mxu0
        %v1268 = vpop.f32.mrf.mxu0
        %v1269 = vadd.f32 %v1172, %v1268
        %v1270 = vpop.f32.mrf.mxu0
        %1271 = vmatprep.mubr.bf16.mxu0 %v633
        %1272 = vmatmul.mubr.bf16.gmra.mxu0 %v632
        %v1273 = vpop.f32.mrf.mxu0
        %v1274 = vadd.f32 %v1177, %v1273
        %v1275 = vpop.f32.mrf.mxu0
        %v1276 = vpop.f32.mrf.mxu0
        %v1277 = vadd.f32 %v1180, %v1276
        %v1278 = vpop.f32.mrf.mxu0
        %1279 = vmatprep.mubr.bf16.mxu0 %v641
        %1280 = vmatmul.mubr.bf16.gmra.mxu0 %v640
        %v1281 = vpop.f32.mrf.mxu0
        %v1282 = vadd.f32 %v1185, %v1281
        %v1283 = vpop.f32.mrf.mxu0
        %v1284 = vpop.f32.mrf.mxu0
        %v1285 = vadd.f32 %v1188, %v1284
        %v1286 = vpop.f32.mrf.mxu0
        %1287 = vmatprep.mubr.bf16.mxu0 %v649
        %1288 = vmatmul.mubr.bf16.gmra.mxu0 %v648
        %v1289 = vpop.f32.mrf.mxu0
        %v1290 = vadd.f32 %v1193, %v1289
        %v1291 = vpop.f32.mrf.mxu0
        %v1292 = vpop.f32.mrf.mxu0
        %v1293 = vadd.f32 %v1196, %v1292
        %v1294 = vpop.f32.mrf.mxu0
        %1295 = vmatprep.mubr.bf16.mxu0 %v657
        %1296 = vmatmul.mubr.bf16.gmra.mxu0 %v656
        %v1297 = vpop.f32.mrf.mxu0
        %v1298 = vadd.f32 %v1201, %v1297
        %v1299 = vpop.f32.mrf.mxu0
        %v1300 = vpop.f32.mrf.mxu0
        %v1301 = vadd.f32 %v1204, %v1300
        %v1302 = vpop.f32.mrf.mxu0
        %1303 = vmatprep.mubr.bf16.mxu0 %v665
        %1304 = vmatmul.mubr.bf16.gmra.mxu0 %v664
        %v1305 = vpop.f32.mrf.mxu0
        %v1306 = vadd.f32 %v1209, %v1305
        %v1307 = vpop.f32.mrf.mxu0
        %v1308 = vpop.f32.mrf.mxu0
        %v1309 = vadd.f32 %v1212, %v1308
        %v1310 = vpop.f32.mrf.mxu0
        %1311 = vmatprep.mubr.bf16.mxu0 %v673
        %1312 = vmatmul.mubr.bf16.gmra.mxu0 %v672
        %v1313 = vpop.f32.mrf.mxu0
        %v1314 = vadd.f32 %v1217, %v1313
        %v1315 = vpop.f32.mrf.mxu0
        %v1316 = vpop.f32.mrf.mxu0
        %v1317 = vadd.f32 %v1220, %v1316
        %v1318 = vpop.f32.mrf.mxu0
        %1319 = vdwg.mxu0
        %1320 = vmatprep.subr.bf16.mxu0 0
        %1321 = vmatpush1.bf16.msra.mxu0 %v1037
        %1322 = vmatprep.subr.bf16.mxu0 0
        %1323 = vmatpush1.bf16.msra.mxu0 %v1036
        %1324 = vmatprep.subr.bf16.mxu0 0
        %1325 = vmatpush1.bf16.msra.mxu0 %v1035
        %1326 = vmatprep.subr.bf16.mxu0 0
        %1327 = vmatpush1.bf16.msra.mxu0 %v1034
        %1328 = vmatprep.subr.bf16.mxu0 0
        %1329 = vmatpush1.bf16.msra.mxu0 %v1033
        %1330 = vmatprep.subr.bf16.mxu0 0
        %1331 = vmatpush1.bf16.msra.mxu0 %v1032
        %1332 = vmatprep.subr.bf16.mxu0 0
        %1333 = vmatpush1.bf16.msra.mxu0 %v1031
        %1334 = vmatprep.subr.bf16.mxu0 0
        %1335 = vmatpush1.bf16.msra.mxu0 %v1030
        %1336 = vmatprep.subr.bf16.mxu0 0
        %1337 = vmatpush2.bf16.msra.mxu0 %v1045
        %1338 = vmatprep.subr.bf16.mxu0 0
        %1339 = vmatpush2.bf16.msra.mxu0 %v1044
        %1340 = vmatprep.subr.bf16.mxu0 0
        %1341 = vmatpush2.bf16.msra.mxu0 %v1043
        %1342 = vmatprep.subr.bf16.mxu0 0
        %1343 = vmatpush2.bf16.msra.mxu0 %v1042
        %1344 = vmatprep.subr.bf16.mxu0 0
        %1345 = vmatpush2.bf16.msra.mxu0 %v1041
        %1346 = vmatprep.subr.bf16.mxu0 0
        %1347 = vmatpush2.bf16.msra.mxu0 %v1040
        %1348 = vmatprep.subr.bf16.mxu0 0
        %1349 = vmatpush2.bf16.msra.mxu0 %v1039
        %1350 = vmatprep.subr.bf16.mxu0 0
        %1351 = vmatpush2.bf16.msra.mxu0 %v1038
        %1352 = vmatprep.mubr.bf16.mxu0 %v619
        %1353 = vmatmul.mubr.bf16.gmra.mxu0 %v618
        %v1354 = vpop.f32.mrf.mxu0
        %v1355 = vadd.f32 %v1258, %v1354
        %v1356 = vpop.f32.mrf.mxu0
        %v1357 = vpop.f32.mrf.mxu0
        %v1358 = vadd.f32 %v1261, %v1357
        %v1359 = vpop.f32.mrf.mxu0
        %1360 = vmatprep.mubr.bf16.mxu0 %v627
        %1361 = vmatmul.mubr.bf16.gmra.mxu0 %v626
        %v1362 = vpop.f32.mrf.mxu0
        %v1363 = vadd.f32 %v1266, %v1362
        %v1364 = vpop.f32.mrf.mxu0
        %v1365 = vpop.f32.mrf.mxu0
        %v1366 = vadd.f32 %v1269, %v1365
        %v1367 = vpop.f32.mrf.mxu0
        %1368 = vmatprep.mubr.bf16.mxu0 %v635
        %1369 = vmatmul.mubr.bf16.gmra.mxu0 %v634
        %v1370 = vpop.f32.mrf.mxu0
        %v1371 = vadd.f32 %v1274, %v1370
        %v1372 = vpop.f32.mrf.mxu0
        %v1373 = vpop.f32.mrf.mxu0
        %v1374 = vadd.f32 %v1277, %v1373
        %v1375 = vpop.f32.mrf.mxu0
        %1376 = vmatprep.mubr.bf16.mxu0 %v643
        %1377 = vmatmul.mubr.bf16.gmra.mxu0 %v642
        %v1378 = vpop.f32.mrf.mxu0
        %v1379 = vadd.f32 %v1282, %v1378
        %v1380 = vpop.f32.mrf.mxu0
        %v1381 = vpop.f32.mrf.mxu0
        %v1382 = vadd.f32 %v1285, %v1381
        %v1383 = vpop.f32.mrf.mxu0
        %1384 = vmatprep.mubr.bf16.mxu0 %v651
        %1385 = vmatmul.mubr.bf16.gmra.mxu0 %v650
        %v1386 = vpop.f32.mrf.mxu0
        %v1387 = vadd.f32 %v1290, %v1386
        %v1388 = vpop.f32.mrf.mxu0
        %v1389 = vpop.f32.mrf.mxu0
        %v1390 = vadd.f32 %v1293, %v1389
        %v1391 = vpop.f32.mrf.mxu0
        %1392 = vmatprep.mubr.bf16.mxu0 %v659
        %1393 = vmatmul.mubr.bf16.gmra.mxu0 %v658
        %v1394 = vpop.f32.mrf.mxu0
        %v1395 = vadd.f32 %v1298, %v1394
        %v1396 = vpop.f32.mrf.mxu0
        %v1397 = vpop.f32.mrf.mxu0
        %v1398 = vadd.f32 %v1301, %v1397
        %v1399 = vpop.f32.mrf.mxu0
        %1400 = vmatprep.mubr.bf16.mxu0 %v667
        %1401 = vmatmul.mubr.bf16.gmra.mxu0 %v666
        %v1402 = vpop.f32.mrf.mxu0
        %v1403 = vadd.f32 %v1306, %v1402
        %v1404 = vpop.f32.mrf.mxu0
        %v1405 = vpop.f32.mrf.mxu0
        %v1406 = vadd.f32 %v1309, %v1405
        %v1407 = vpop.f32.mrf.mxu0
        %1408 = vmatprep.mubr.bf16.mxu0 %v675
        %1409 = vmatmul.mubr.bf16.gmra.mxu0 %v674
        %v1410 = vpop.f32.mrf.mxu0
        %v1411 = vadd.f32 %v1314, %v1410
        %v1412 = vpop.f32.mrf.mxu0
        %v1413 = vpop.f32.mrf.mxu0
        %v1414 = vadd.f32 %v1317, %v1413
        %v1415 = vpop.f32.mrf.mxu0
        %1416 = vdwg.mxu0
        %1417 = vmatprep.subr.bf16.mxu0 0
        %1418 = vmatpush1.bf16.msra.mxu0 %v1053
        %1419 = vmatprep.subr.bf16.mxu0 0
        %1420 = vmatpush1.bf16.msra.mxu0 %v1052
        %1421 = vmatprep.subr.bf16.mxu0 0
        %1422 = vmatpush1.bf16.msra.mxu0 %v1051
        %1423 = vmatprep.subr.bf16.mxu0 0
        %1424 = vmatpush1.bf16.msra.mxu0 %v1050
        %1425 = vmatprep.subr.bf16.mxu0 0
        %1426 = vmatpush1.bf16.msra.mxu0 %v1049
        %1427 = vmatprep.subr.bf16.mxu0 0
        %1428 = vmatpush1.bf16.msra.mxu0 %v1048
        %1429 = vmatprep.subr.bf16.mxu0 0
        %1430 = vmatpush1.bf16.msra.mxu0 %v1047
        %1431 = vmatprep.subr.bf16.mxu0 0
        %1432 = vmatpush1.bf16.msra.mxu0 %v1046
        %1433 = vmatprep.subr.bf16.mxu0 0
        %1434 = vmatpush2.bf16.msra.mxu0 %v1061
        %1435 = vmatprep.subr.bf16.mxu0 0
        %1436 = vmatpush2.bf16.msra.mxu0 %v1060
        %1437 = vmatprep.subr.bf16.mxu0 0
        %1438 = vmatpush2.bf16.msra.mxu0 %v1059
        %1439 = vmatprep.subr.bf16.mxu0 0
        %1440 = vmatpush2.bf16.msra.mxu0 %v1058
        %1441 = vmatprep.subr.bf16.mxu0 0
        %1442 = vmatpush2.bf16.msra.mxu0 %v1057
        %1443 = vmatprep.subr.bf16.mxu0 0
        %1444 = vmatpush2.bf16.msra.mxu0 %v1056
        %1445 = vmatprep.subr.bf16.mxu0 0
        %1446 = vmatpush2.bf16.msra.mxu0 %v1055
        %1447 = vmatprep.subr.bf16.mxu0 0
        %1448 = vmatpush2.bf16.msra.mxu0 %v1054
        %1449 = vmatprep.mubr.bf16.mxu0 %v621
        %1450 = vmatmul.mubr.bf16.gmra.mxu0 %v620
        %v1451 = vpop.f32.mrf.mxu0
        %v1452 = vadd.f32 %v1355, %v1451
        %v1453 = vpop.f32.mrf.mxu0
        %v1454 = vpop.f32.mrf.mxu0
        %v1455 = vadd.f32 %v1358, %v1454
        %v1456 = vpop.f32.mrf.mxu0
        %1457 = vmatprep.mubr.bf16.mxu0 %v629
        %1458 = vmatmul.mubr.bf16.gmra.mxu0 %v628
        %v1459 = vpop.f32.mrf.mxu0
        %v1460 = vadd.f32 %v1363, %v1459
        %v1461 = vpop.f32.mrf.mxu0
        %v1462 = vpop.f32.mrf.mxu0
        %v1463 = vadd.f32 %v1366, %v1462
        %v1464 = vpop.f32.mrf.mxu0
        %1465 = vmatprep.mubr.bf16.mxu0 %v637
        %1466 = vmatmul.mubr.bf16.gmra.mxu0 %v636
        %v1467 = vpop.f32.mrf.mxu0
        %v1468 = vadd.f32 %v1371, %v1467
        %v1469 = vpop.f32.mrf.mxu0
        %v1470 = vpop.f32.mrf.mxu0
        %v1471 = vadd.f32 %v1374, %v1470
        %v1472 = vpop.f32.mrf.mxu0
        %1473 = vmatprep.mubr.bf16.mxu0 %v645
        %1474 = vmatmul.mubr.bf16.gmra.mxu0 %v644
        %v1475 = vpop.f32.mrf.mxu0
        %v1476 = vadd.f32 %v1379, %v1475
        %v1477 = vpop.f32.mrf.mxu0
        %v1478 = vpop.f32.mrf.mxu0
        %v1479 = vadd.f32 %v1382, %v1478
        %v1480 = vpop.f32.mrf.mxu0
        %1481 = vmatprep.mubr.bf16.mxu0 %v653
        %1482 = vmatmul.mubr.bf16.gmra.mxu0 %v652
        %v1483 = vpop.f32.mrf.mxu0
        %v1484 = vadd.f32 %v1387, %v1483
        %v1485 = vpop.f32.mrf.mxu0
        %v1486 = vpop.f32.mrf.mxu0
        %v1487 = vadd.f32 %v1390, %v1486
        %v1488 = vpop.f32.mrf.mxu0
        %1489 = vmatprep.mubr.bf16.mxu0 %v661
        %1490 = vmatmul.mubr.bf16.gmra.mxu0 %v660
        %v1491 = vpop.f32.mrf.mxu0
        %v1492 = vadd.f32 %v1395, %v1491
        %v1493 = vpop.f32.mrf.mxu0
        %v1494 = vpop.f32.mrf.mxu0
        %v1495 = vadd.f32 %v1398, %v1494
        %v1496 = vpop.f32.mrf.mxu0
        %1497 = vmatprep.mubr.bf16.mxu0 %v669
        %1498 = vmatmul.mubr.bf16.gmra.mxu0 %v668
        %v1499 = vpop.f32.mrf.mxu0
        %v1500 = vadd.f32 %v1403, %v1499
        %v1501 = vpop.f32.mrf.mxu0
        %v1502 = vpop.f32.mrf.mxu0
        %v1503 = vadd.f32 %v1406, %v1502
        %v1504 = vpop.f32.mrf.mxu0
        %1505 = vmatprep.mubr.bf16.mxu0 %v677
        %1506 = vmatmul.mubr.bf16.gmra.mxu0 %v676
        %v1507 = vpop.f32.mrf.mxu0
        %v1508 = vadd.f32 %v1411, %v1507
        %v1509 = vpop.f32.mrf.mxu0
        %v1510 = vpop.f32.mrf.mxu0
        %v1511 = vadd.f32 %v1414, %v1510
        %v1512 = vpop.f32.mrf.mxu0
        %1513 = vdwg.mxu0
        %s1514 = sld [smem:[#allocation2]]
        %vm1515 = vcmp.ge.f32.partialorder %v1452, 0.0
        %vm1516 = vcmp.ge.f32.partialorder %v1455, 0.0
        %vm1517 = vcmp.ge.f32.partialorder %v1460, 0.0
        %vm1518 = vcmp.ge.f32.partialorder %v1463, 0.0
        %vm1519 = vcmp.ge.f32.partialorder %v1468, 0.0
        %vm1520 = vcmp.ge.f32.partialorder %v1471, 0.0
        %vm1521 = vcmp.ge.f32.partialorder %v1476, 0.0
        %vm1522 = vcmp.ge.f32.partialorder %v1479, 0.0
        %vm1523 = vcmp.ge.f32.partialorder %v1484, 0.0
        %vm1524 = vcmp.ge.f32.partialorder %v1487, 0.0
        %vm1525 = vcmp.ge.f32.partialorder %v1492, 0.0
        %vm1526 = vcmp.ge.f32.partialorder %v1495, 0.0
        %vm1527 = vcmp.ge.f32.partialorder %v1500, 0.0
        %vm1528 = vcmp.ge.f32.partialorder %v1503, 0.0
        %vm1529 = vcmp.ge.f32.partialorder %v1508, 0.0
        %vm1530 = vcmp.ge.f32.partialorder %v1511, 0.0
        %v1531 = vstv %s1514
        %v1532 = vmul.f32 %v1531, %v1452
        %v1533 = vmul.f32 %v1531, %v1455
        %v1534 = vmul.f32 %v1531, %v1460
        %v1535 = vmul.f32 %v1531, %v1463
        %v1536 = vmul.f32 %v1531, %v1468
        %v1537 = vmul.f32 %v1531, %v1471
        %v1538 = vmul.f32 %v1531, %v1476
        %v1539 = vmul.f32 %v1531, %v1479
        %v1540 = vmul.f32 %v1531, %v1484
        %v1541 = vmul.f32 %v1531, %v1487
        %v1542 = vmul.f32 %v1531, %v1492
        %v1543 = vmul.f32 %v1531, %v1495
        %v1544 = vmul.f32 %v1531, %v1500
        %v1545 = vmul.f32 %v1531, %v1503
        %v1546 = vmul.f32 %v1531, %v1508
        %v1547 = vmul.f32 %v1531, %v1511
        %v1548 = vsel %vm1515, %v1452, %v1532
        %v1549 = vsel %vm1516, %v1455, %v1533
        %v1550 = vsel %vm1517, %v1460, %v1534
        %v1551 = vsel %vm1518, %v1463, %v1535
        %v1552 = vsel %vm1519, %v1468, %v1536
        %v1553 = vsel %vm1520, %v1471, %v1537
        %v1554 = vsel %vm1521, %v1476, %v1538
        %v1555 = vsel %vm1522, %v1479, %v1539
        %v1556 = vsel %vm1523, %v1484, %v1540
        %v1557 = vsel %vm1524, %v1487, %v1541
        %v1558 = vsel %vm1525, %v1492, %v1542
        %v1559 = vsel %vm1526, %v1495, %v1543
        %v1560 = vsel %vm1527, %v1500, %v1544
        %v1561 = vsel %vm1528, %v1503, %v1545
        %v1562 = vsel %vm1529, %v1508, %v1546
        %v1563 = vsel %vm1530, %v1511, %v1547
        %1564 = vxpose.xlu0.b32.start [1/16] %v1548, 128
        %1565 = vxpose.xlu0.b32.cont [2/16] %v1549, 128
        %1566 = vxpose.xlu0.b32.cont [3/16] %v1550, 128
        %1567 = vxpose.xlu0.b32.cont [4/16] %v1551, 128
        %1568 = vxpose.xlu0.b32.cont [5/16] %v1552, 128
        %1569 = vxpose.xlu0.b32.cont [6/16] %v1553, 128
        %1570 = vxpose.xlu0.b32.cont [7/16] %v1554, 128
        %1571 = vxpose.xlu0.b32.cont [8/16] %v1555, 128
        %1572 = vxpose.xlu0.b32.cont [9/16] %v1556, 128
        %1573 = vxpose.xlu0.b32.cont [10/16] %v1557, 128
        %1574 = vxpose.xlu0.b32.cont [11/16] %v1558, 128
        %1575 = vxpose.xlu0.b32.cont [12/16] %v1559, 128
        %1576 = vxpose.xlu0.b32.cont [13/16] %v1560, 128
        %1577 = vxpose.xlu0.b32.cont [14/16] %v1561, 128
        %1578 = vxpose.xlu0.b32.cont [15/16] %v1562, 128
        %1579 = vxpose.xlu0.b32.end [16/16] %v1563, 128
        %v1580 = vpop.trf.xlu0
        %v1581 = vpop.trf.xlu0
        %v1582 = vpop.trf.xlu0
        %v1583 = vpop.trf.xlu0
        %v1584 = vpop.trf.xlu0
        %v1585 = vpop.trf.xlu0
        %v1586 = vpop.trf.xlu0
        %v1587 = vpop.trf.xlu0
        %v1588 = vpop.trf.xlu0
        %v1589 = vpop.trf.xlu0
        %v1590 = vpop.trf.xlu0
        %v1591 = vpop.trf.xlu0
        %v1592 = vpop.trf.xlu0
        %v1593 = vpop.trf.xlu0
        %v1594 = vpop.trf.xlu0
        %v1595 = vpop.trf.xlu0
        %1596 = vst [vmem:[%s226] sm:$0xff] %v1580
        %1597 = vst [vmem:[%s226 + $0x8] sm:$0xff] %v1581
        %1598 = vst [vmem:[%s226 + $0x10] sm:$0xff] %v1582
        %1599 = vst [vmem:[%s226 + $0x18] sm:$0xff] %v1583
        %1600 = vst [vmem:[%s226 + $0x20] sm:$0xff] %v1584
        %1601 = vst [vmem:[%s226 + $0x28] sm:$0xff] %v1585
        %1602 = vst [vmem:[%s226 + $0x30] sm:$0xff] %v1586
        %1603 = vst [vmem:[%s226 + $0x38] sm:$0xff] %v1587
        %1604 = vst [vmem:[%s226 + $0x40] sm:$0xff] %v1588
        %1605 = vst [vmem:[%s226 + $0x48] sm:$0xff] %v1589
        %1606 = vst [vmem:[%s226 + $0x50] sm:$0xff] %v1590
        %1607 = vst [vmem:[%s226 + $0x58] sm:$0xff] %v1591
        %1608 = vst [vmem:[%s226 + $0x60] sm:$0xff] %v1592
        %1609 = vst [vmem:[%s226 + $0x68] sm:$0xff] %v1593
        %1610 = vst [vmem:[%s226 + $0x70] sm:$0xff] %v1594
        %1611 = vst [vmem:[%s226 + $0x78] sm:$0xff] %v1595
        %s1612 = sand.u32 %s117, 1
        %s1613 = scalar_lea.sflag [#allocation5], %s1612
        %s1614 = sand.u32 %s117, 1
        %s1615 = smul.addr %s1614, 128
        %s1616 = scalar_lea.vmem [#allocation8], %s1615
        // Predicated region
        $region41: #{tpu_custom_call.1} parent=31 // pred_check
          %p1617 = pneg %p127
        $region42: #{tpu_custom_call.1} parent=31 // pred_check_branch
          %1619 = sbr.rel (%p1617) target = $region44
        $region43: #{tpu_custom_call.1} parent=31 // pred_region
          %s1620 = smul.u32 16, %s27
          %s1622 = ssub.s32 2048, 2048
          %1623 = vsyncadd %s1613, %s1622
          %s1624 = smul.addr %s1620, 4
          %s1625 = sadd.s32 %s26, %s1624
          %s1626 = smul.addr %s1625, 128
          %s1627 = scalar_lea.hbm %s3, %s1626
          %s1628 = sshll.u32 %s1616, 4
          %s1629 = int_to_ptr.vmem [resolvable:$true] %s1628
          %1634 = dma.vmem_to_hbm [thread:$0]  %s1629, 2048, %s1627, %s1613, 128, 512, 8
        $region44: #{tpu_custom_call.1} parent=31 // pred_fallthru
          _
      $region32: #{tpu_custom_call.1} parent=5 // pred_fallthru
        _
      %p1635 = scmp.le.s32.totalorder 2, %s17
      // Predicated region
      $region45: #{tpu_custom_call.1} parent=5 // pred_check
        %p1636 = pneg %p1635
      $region46: #{tpu_custom_call.1} parent=5 // pred_check_branch
        %1638 = sbr.rel (%p1636) target = $region48
      $region47: #{tpu_custom_call.1} parent=5 // pred_region
        %s1639 = ssub.s32 %s17, 2
        // Predicated region
        $region49: #{tpu_custom_call.1} parent=47 // pred_check
          %p1640 = pneg %p133
        $region50: #{tpu_custom_call.1} parent=47 // pred_check_branch
          %1642 = sbr.rel (%p1640) target = $region52
        $region51: #{tpu_custom_call.1} parent=47 // pred_region
          %s1643 = sand.u32 %s118, 1
          %s1644 = scalar_lea.sflag [#allocation5], %s1643
          %s1645 = sand.u32 %s118, 1
          %s1646 = smul.addr %s1645, 128
          %s1647 = scalar_lea.vmem [#allocation8], %s1646
          %1648 = dma.done %s1644, 2048
        $region52: #{tpu_custom_call.1} parent=47 // pred_fallthru
          _
      $region48: #{tpu_custom_call.1} parent=5 // pred_fallthru
        _
    $region6: #{tpu_custom_call.1} parent=1 // loop_footer
      %s21 = sadd.s32 1, %s17
    $region7: #{tpu_custom_call.1} parent=1 // loop_footer_branch
      %16 = sbr.rel target = $region3
    $region8: #{tpu_custom_call.1} parent=1 // loop_exit
      _
    %1649 = vsyncpa [#allocation4], 1
    %s1650 = scalar_lea.sflag [#allocation4], 1
    %1651 = vsyncpa %s1650, 1
    %1652 = vsyncpa [#allocation7], 1
    %1653 = vsyncpa [#allocation5], 1
    %s1654 = scalar_lea.sflag [#allocation5], 1
    %1655 = vsyncpa %s1654, 1

</llo_original>
